<compile_context>
chip_gen: v5e
topology: v5e:2x2
jax: 0.10.0
libtpu: 0.0.40
codegen_flags: <defaults>
</compile_context>

<pallas_src>
import functools

import jax
import jax.numpy as jnp
from jax import lax
from jax.experimental import pallas as pl
from jax.experimental.pallas import tpu as pltpu


def sepconv_kernel(x_ref, pww_ref, pwb_ref, dww_ref, dwb_ref, out_ref, zp_ref,
                   *, W: int, chunk: int, act: bool, use_bf16: bool):
    """Fused 1x1 conv (+BN1) -> depthwise 3x3 pad=1 (+BN2) [-> ReLU].

    Channels-minor layout: spatial (h, w) flattened to rows p = h*W + w
    (sublanes), channels on lanes.

      x_ref:   (1, H*W, Cin)
      pww_ref: (Cin, Cout)       1x1 weight, BN1 scale folded in
      pwb_ref: (1, Cout)         1x1 bias + BN1 shift
      dww_ref: (9, Cout)         depthwise taps (row = 3*ky + kx), BN2 scale folded
      dwb_ref: (1, Cout)         depthwise bias + BN2 shift
      out_ref: (1, H*W, Cout)
      zp_ref:  (H*W + 2*P, Cout) scratch; P >= W+1 zero rows top/bottom give the
                                 vertical conv padding.
    """
    HW = out_ref.shape[1]
    Cout = out_ref.shape[2]
    P = (zp_ref.shape[0] - HW) // 2

    # ---- vertical zero-padding rows (unconditional -> megacore-safe) --------
    zp_ref[0:P, :] = jnp.zeros((P, Cout), jnp.float32)
    zp_ref[P + HW:, :] = jnp.zeros((P, Cout), jnp.float32)

    # ---- pointwise 1x1 conv + folded BN1: ONE MXU matmul, one aligned store -
    xm = x_ref[0]
    wm = pww_ref[...]
    if use_bf16:
        z = jnp.dot(xm.astype(jnp.bfloat16), wm.astype(jnp.bfloat16),
                    preferred_element_type=jnp.float32)
    else:
        z = jnp.dot(xm.astype(jnp.float32), wm.astype(jnp.float32),
                    preferred_element_type=jnp.float32,
                    precision=lax.Precision.HIGHEST)
    zp_ref[P:P + HW, :] = z + pwb_ref[...].astype(jnp.float32)

    # ---- depthwise 3x3 (padding=1) + folded BN2, chunked over spatial rows --
    # Hoisted loop invariants: tap rows, bias, horizontal-border masks
    # (chunk % W == 0, so the per-column mask pattern is chunk-invariant).
    tap = [dww_ref[k:k + 1, :].astype(jnp.float32) for k in range(9)]  # (1,Cout)
    dwb = dwb_ref[...].astype(jnp.float32)                             # (1,Cout)
    col = lax.broadcasted_iota(jnp.int32, (chunk, 1), 0)
    w_col = lax.rem(col, jnp.full((chunk, 1), W, jnp.int32))
    lmask = (w_col != 0).astype(jnp.float32)          # valid cols for dx = -1
    rmask = (w_col != W - 1).astype(jnp.float32)      # valid cols for dx = +1

    def chunk_body(ci, carry):
        off = pl.multiple_of(ci * chunk, chunk)       # chunk-aligned row offset
        acc = jnp.broadcast_to(dwb, (chunk, Cout))    # start from the bias
        for kx in (1, 0, 2):                          # dx = kx - 1
            g = None
            for ky in range(3):                       # dy = ky - 1
                start = off + (P + (ky - 1) * W + (kx - 1))
                win = zp_ref[pl.ds(start, chunk), :]
                term = win * tap[3 * ky + kx]
                g = term if g is None else g + term
            if kx == 0:
                g = g * lmask
            elif kx == 2:
                g = g * rmask
            acc = acc + g
        if act:
            acc = jnp.maximum(acc, 0.0)
        out_ref[0, pl.ds(off, chunk), :] = acc.astype(out_ref.dtype)
        return carry

    lax.fori_loop(0, HW // chunk, chunk_body, 0)


def fold_params(raw_params, eps=1e-5):
    """Fold eval-mode BatchNorms into the conv weights/biases."""
    (w1, b1, g1, be1, m1, v1, w2, b2, g2, be2, m2, v2) = raw_params
    s1 = g1 / jnp.sqrt(v1 + eps)
    pw_w = jnp.transpose(w1 * s1[:, None])                      # (Cin, Cout)
    pw_b = (be1 + s1 * (b1 - m1)).reshape(1, -1)                # (1, Cout)
    s2 = g2 / jnp.sqrt(v2 + eps)
    dw_w = (jnp.transpose(w2, (1, 2, 0)) * s2).reshape(9, -1)   # (9, Cout)
    dw_b = (be2 + s2 * (b2 - m2)).reshape(1, -1)                # (1, Cout)
    return pw_w, pw_b, dw_w, dw_b


def _pick_depthwise_chunk(H, W):
    """Rows per depthwise chunk: multiple of W, divides H*W, ~64 rows."""
    k = max(1, min(H, max(1, 64 // W)))
    while H % k:
        k -= 1
    return W * k


def seperable_conv2d_pallas_nhwc(x_flat, folded, H, W, *, act=False,
                                 use_bf16_matmul=False):
    """Production entry point.  x_flat: (N, H*W, Cin) channels-minor NHWC."""
    pw_w, pw_b, dw_w, dw_b = folded
    N, HW, Cin = x_flat.shape
    assert HW == H * W
    Cout = pw_w.shape[1]
    P = ((W + 1 + 7) // 8) * 8             # >= W+1 zero rows, 8-row aligned
    chunk = _pick_depthwise_chunk(H, W)
    assert HW % chunk == 0 and chunk % W == 0

    kernel = functools.partial(sepconv_kernel, W=W, chunk=chunk, act=act,
                               use_bf16=use_bf16_matmul)
    # TODO(synk): for production shapes (v7x 64 MiB VMEM) add a spatial grid
    # axis over row tiles with a 1-row halo and set vmem_limit_bytes; the
    # constant weight operands could also be single-buffered.
    return pl.pallas_call(
        kernel,
        out_shape=jax.ShapeDtypeStruct((N, HW, Cout), x_flat.dtype),
        grid_spec=pltpu.PrefetchScalarGridSpec(
            num_scalar_prefetch=0,
            grid=(N,),
            in_specs=[
                pl.BlockSpec((1, HW, Cin), lambda n: (n, 0, 0)),   # activations
                pl.BlockSpec((Cin, Cout), lambda n: (0, 0)),       # 1x1 weight
                pl.BlockSpec((1, Cout), lambda n: (0, 0)),         # 1x1 bias
                pl.BlockSpec((9, Cout), lambda n: (0, 0)),         # dw taps
                pl.BlockSpec((1, Cout), lambda n: (0, 0)),         # dw bias
            ],
            out_specs=pl.BlockSpec((1, HW, Cout), lambda n: (n, 0, 0)),
            scratch_shapes=[pltpu.VMEM((HW + 2 * P, Cout), jnp.float32)],
        ),
        compiler_params=pltpu.CompilerParams(
            dimension_semantics=("parallel",)),
    )(x_flat, pw_w, pw_b, dw_w, dw_b)


def seperable_conv2d_pallas(x_nchw, raw_params, *, act=False, eps=1e-5,
                            use_bf16_matmul=False):
    """PyTorch-interface wrapper (NCHW in / NCHW out).

    The NCHW<->NHWC transposes below exist only to match the PyTorch layout of
    the reference module.  When chaining Xception blocks, keep activations in
    the (N, H*W, C) layout and call seperable_conv2d_pallas_nhwc directly so
    no transpose kernels (full HBM round trips) sit between layers.
    """
    N, Cin, H, W = x_nchw.shape
    folded = fold_params(raw_params, eps)
    x_flat = jnp.transpose(x_nchw, (0, 2, 3, 1)).reshape(N, H * W, Cin)
    out_flat = seperable_conv2d_pallas_nhwc(
        x_flat, folded, H, W, act=act, use_bf16_matmul=use_bf16_matmul)
    Cout = out_flat.shape[-1]
    return jnp.transpose(out_flat.reshape(N, H, W, Cout), (0, 3, 1, 2))


def seperable_conv2d_ref(x_nchw, raw_params, *, act=False, eps=1e-5):
    """Pure-JAX reference mirroring the PyTorch SeperableConv2d forward (eval BN)."""
    (w1, b1, g1, be1, m1, v1, w2, b2, g2, be2, m2, v2) = raw_params
    Cout = w1.shape[0]
    x = jnp.transpose(x_nchw, (0, 2, 3, 1))                    # NHWC
    z = jnp.einsum('nhwc,oc->nhwo', x, w1,
                   precision=lax.Precision.HIGHEST) + b1       # 1x1 conv + bias
    z = (z - m1) / jnp.sqrt(v1 + eps) * g1 + be1               # BN1 (eval)
    dk = jnp.transpose(w2, (1, 2, 0)).reshape(3, 3, 1, Cout)   # depthwise kernel
    d = lax.conv_general_dilated(
        z, dk, window_strides=(1, 1), padding=((1, 1), (1, 1)),
        feature_group_count=Cout,
        dimension_numbers=('NHWC', 'HWIO', 'NHWC'),
        precision=lax.Precision.HIGHEST) + b2
    d = (d - m2) / jnp.sqrt(v2 + eps) * g2 + be2               # BN2 (eval)
    if act:
        d = jnp.maximum(d, 0.0)
    return jnp.transpose(d, (0, 3, 1, 2))                      # back to NCHW


def init_raw_params(key, Cin, Cout):
    """Deterministic synthetic params (torch-like): conv weights/biases + BN stats."""
    ks = jax.random.split(key, 12)
    bnd1 = 1.0 / jnp.sqrt(jnp.float32(Cin))
    w1 = jax.random.uniform(ks[0], (Cout, Cin), jnp.float32, -bnd1, bnd1)
    b1 = jax.random.uniform(ks[1], (Cout,), jnp.float32, -bnd1, bnd1)
    g1 = jax.random.uniform(ks[2], (Cout,), jnp.float32, 0.5, 1.5)
    be1 = 0.1 * jax.random.normal(ks[3], (Cout,), jnp.float32)
    m1 = 0.1 * jax.random.normal(ks[4], (Cout,), jnp.float32)
    v1 = jax.random.uniform(ks[5], (Cout,), jnp.float32, 0.5, 1.5)
    bnd2 = 1.0 / 3.0                                           # 1/sqrt(1*3*3)
    w2 = jax.random.uniform(ks[6], (Cout, 3, 3), jnp.float32, -bnd2, bnd2)
    b2 = jax.random.uniform(ks[7], (Cout,), jnp.float32, -bnd2, bnd2)
    g2 = jax.random.uniform(ks[8], (Cout,), jnp.float32, 0.5, 1.5)
    be2 = 0.1 * jax.random.normal(ks[9], (Cout,), jnp.float32)
    m2 = 0.1 * jax.random.normal(ks[10], (Cout,), jnp.float32)
    v2 = jax.random.uniform(ks[11], (Cout,), jnp.float32, 0.5, 1.5)
    return (w1, b1, g1, be1, m1, v1, w2, b2, g2, be2, m2, v2)


if __name__ == "__main__":
    key = jax.random.PRNGKey(0)
    kx, kp = jax.random.split(key)
    # SeperableConv2d(in_channels=32, out_channels=64) on a small NCHW input.
    N, Cin, Cout, H, W = 2, 32, 64, 16, 16
    x = jax.random.normal(kx, (N, Cin, H, W), jnp.float32)
    raw = init_raw_params(kp, Cin, Cout)

    out = jax.block_until_ready(seperable_conv2d_pallas(x, raw))
    ref = seperable_conv2d_ref(x, raw)
    assert out.shape == (N, Cout, H, W), out.shape
    err = float(jnp.max(jnp.abs(out - ref)))
    assert jnp.allclose(out, ref, rtol=1e-4, atol=1e-4), err
    # TODO(synk): training-mode BatchNorm (running-stat updates) is not modeled;
    # eval-mode BN is folded into the conv weights/biases.
    print("KERNEL_OK")
</pallas_src>

<mosaic_0001>
module attributes {stable_mosaic.version = 11 : i64} {
  func.func @sepconv_kernel(%arg0: i32, %arg1: memref<1x256x32xf32, #tpu.memory_space<vmem>>, %arg2: memref<32x64xf32, #tpu.memory_space<vmem>>, %arg3: memref<1x64xf32, #tpu.memory_space<vmem>>, %arg4: memref<9x64xf32, #tpu.memory_space<vmem>>, %arg5: memref<1x64xf32, #tpu.memory_space<vmem>>, %arg6: memref<1x256x64xf32, #tpu.memory_space<vmem>>, %arg7: memref<304x64xf32, #tpu.memory_space<vmem>>) attributes {dimension_semantics = [#tpu.dimension_semantics<parallel>], iteration_bounds = array<i64: 2>, scalar_prefetch = 0 : i64, scratch_operands = 1 : i64, tpu.core_type = #tpu.core_type<tc>, window_params = [{transform_indices = @transform_0, window_bounds = array<i64: 1, 256, 32>}, {pipeline_mode = #tpu.pipeline_mode<synchronous>, transform_indices = @transform_1, window_bounds = array<i64: 32, 64>}, {pipeline_mode = #tpu.pipeline_mode<synchronous>, transform_indices = @transform_2, window_bounds = array<i64: 1, 64>}, {pipeline_mode = #tpu.pipeline_mode<synchronous>, transform_indices = @transform_3, window_bounds = array<i64: 9, 64>}, {pipeline_mode = #tpu.pipeline_mode<synchronous>, transform_indices = @transform_4, window_bounds = array<i64: 1, 64>}, {transform_indices = @transform_5, window_bounds = array<i64: 1, 256, 64>}]} {
    %cst = arith.constant 0.000000e+00 : f32
    %0 = vector.broadcast %cst : f32 to vector<24x64xf32>
    %c0 = arith.constant 0 : index
    %c0_0 = arith.constant 0 : index
    %1 = vector.load %arg7[%c0, %c0_0] : memref<304x64xf32, #tpu.memory_space<vmem>>, vector<24x64xf32>
    tpu.vector_store %arg7[%c0, %c0_0], %0 {strides = array<i32>} : memref<304x64xf32, #tpu.memory_space<vmem>>, vector<24x64xf32>,
    %cst_1 = arith.constant 0.000000e+00 : f32
    %2 = vector.broadcast %cst_1 : f32 to vector<24x64xf32>
    %c280 = arith.constant 280 : index
    %c0_2 = arith.constant 0 : index
    %3 = vector.load %arg7[%c280, %c0_2] : memref<304x64xf32, #tpu.memory_space<vmem>>, vector<24x64xf32>
    tpu.vector_store %arg7[%c280, %c0_2], %2 {strides = array<i32>} : memref<304x64xf32, #tpu.memory_space<vmem>>, vector<24x64xf32>,
    %c0_3 = arith.constant 0 : index
    %c0_4 = arith.constant 0 : index
    %c0_5 = arith.constant 0 : index
    %4 = vector.load %arg1[%c0_3, %c0_4, %c0_5] : memref<1x256x32xf32, #tpu.memory_space<vmem>>, vector<1x256x32xf32>
    %5 = vector.shape_cast %4 : vector<1x256x32xf32> to vector<256x32xf32>
    %c0_6 = arith.constant 0 : index
    %c0_7 = arith.constant 0 : index
    %6 = vector.load %arg2[%c0_6, %c0_7] : memref<32x64xf32, #tpu.memory_space<vmem>>, vector<32x64xf32>
    %cst_8 = arith.constant dense<0.000000e+00> : vector<256x64xf32>
    %7 = tpu.matmul %5, %6, %cst_8 {dimension_numbers = #tpu.dot_dimension_numbers<[1], [0], [0], [1], [0, 0, 1, 1], [], []>, precision = #tpu.contract_precision<fp32>} : vector<256x32xf32>, vector<32x64xf32>, vector<256x64xf32> -> vector<256x64xf32>
    %c0_9 = arith.constant 0 : index
    %c0_10 = arith.constant 0 : index
    %8 = vector.load %arg3[%c0_9, %c0_10] : memref<1x64xf32, #tpu.memory_space<vmem>>, vector<1x64xf32>
    %9 = vector.broadcast %8 : vector<1x64xf32> to vector<256x64xf32>
    %10 = arith.addf %7, %9 : vector<256x64xf32>
    %c24 = arith.constant 24 : index
    %c0_11 = arith.constant 0 : index
    %11 = vector.load %arg7[%c24, %c0_11] : memref<304x64xf32, #tpu.memory_space<vmem>>, vector<256x64xf32>
    tpu.vector_store %arg7[%c24, %c0_11], %10 {strides = array<i32>} : memref<304x64xf32, #tpu.memory_space<vmem>>, vector<256x64xf32>,
    %c0_12 = arith.constant 0 : index
    %c0_13 = arith.constant 0 : index
    %12 = vector.load %arg4[%c0_12, %c0_13] : memref<9x64xf32, #tpu.memory_space<vmem>>, vector<1x64xf32>
    %c1 = arith.constant 1 : index
    %c0_14 = arith.constant 0 : index
    %13 = vector.load %arg4[%c1, %c0_14] : memref<9x64xf32, #tpu.memory_space<vmem>>, vector<1x64xf32>
    %c2 = arith.constant 2 : index
    %c0_15 = arith.constant 0 : index
    %14 = vector.load %arg4[%c2, %c0_15] : memref<9x64xf32, #tpu.memory_space<vmem>>, vector<1x64xf32>
    %c3 = arith.constant 3 : index
    %c0_16 = arith.constant 0 : index
    %15 = vector.load %arg4[%c3, %c0_16] : memref<9x64xf32, #tpu.memory_space<vmem>>, vector<1x64xf32>
    %c4 = arith.constant 4 : index
    %c0_17 = arith.constant 0 : index
    %16 = vector.load %arg4[%c4, %c0_17] : memref<9x64xf32, #tpu.memory_space<vmem>>, vector<1x64xf32>
    %c5 = arith.constant 5 : index
    %c0_18 = arith.constant 0 : index
    %17 = vector.load %arg4[%c5, %c0_18] : memref<9x64xf32, #tpu.memory_space<vmem>>, vector<1x64xf32>
    %c6 = arith.constant 6 : index
    %c0_19 = arith.constant 0 : index
    %18 = vector.load %arg4[%c6, %c0_19] : memref<9x64xf32, #tpu.memory_space<vmem>>, vector<1x64xf32>
    %c7 = arith.constant 7 : index
    %c0_20 = arith.constant 0 : index
    %19 = vector.load %arg4[%c7, %c0_20] : memref<9x64xf32, #tpu.memory_space<vmem>>, vector<1x64xf32>
    %c8 = arith.constant 8 : index
    %c0_21 = arith.constant 0 : index
    %20 = vector.load %arg4[%c8, %c0_21] : memref<9x64xf32, #tpu.memory_space<vmem>>, vector<1x64xf32>
    %c0_22 = arith.constant 0 : index
    %c0_23 = arith.constant 0 : index
    %21 = vector.load %arg5[%c0_22, %c0_23] : memref<1x64xf32, #tpu.memory_space<vmem>>, vector<1x64xf32>
    %22 = tpu.iota {dimensions = array<i32: 0>} : vector<64x1xi32>
    %c16_i32 = arith.constant 16 : i32
    %23 = vector.broadcast %c16_i32 : i32 to vector<64x1xi32>
    %24 = arith.remsi %22, %23 : vector<64x1xi32>
    %c0_i32 = arith.constant 0 : i32
    %25 = vector.broadcast %c0_i32 : i32 to vector<64x1xi32>
    %26 = arith.cmpi ne, %24, %25 : vector<64x1xi32>
    %27 = arith.extui %26 : vector<64x1xi1> to vector<64x1xi32>
    %28 = arith.sitofp %27 : vector<64x1xi32> to vector<64x1xf32>
    %c15_i32 = arith.constant 15 : i32
    %29 = vector.broadcast %c15_i32 : i32 to vector<64x1xi32>
    %30 = arith.cmpi ne, %24, %29 : vector<64x1xi32>
    %31 = arith.extui %30 : vector<64x1xi1> to vector<64x1xi32>
    %32 = arith.sitofp %31 : vector<64x1xi32> to vector<64x1xf32>
    %c0_i32_24 = arith.constant 0 : i32
    %c4_i32 = arith.constant 4 : i32
    %33 = arith.addi %c0_i32_24, %c4_i32 : i32
    %c1_i32 = arith.constant 1 : i32
    scf.for %arg8 = %c0_i32_24 to %33 step %c1_i32  : i32 {
      %c64_i32 = arith.constant 64 : i32
      %34 = arith.muli %arg8, %c64_i32 : i32
      %35 = tpu.assume_multiple %34, 64 : i32
      %36 = vector.shape_cast %21 : vector<1x64xf32> to vector<1x64xf32>
      %37 = vector.broadcast %36 : vector<1x64xf32> to vector<64x64xf32>
      %c8_i32 = arith.constant 8 : i32
      %38 = arith.addi %35, %c8_i32 : i32
      %39 = arith.index_cast %38 : i32 to index
      %c0_26 = arith.constant 0 : index
      %40 = vector.load %arg7[%39, %c0_26] : memref<304x64xf32, #tpu.memory_space<vmem>>, vector<64x64xf32>
      %41 = vector.broadcast %13 : vector<1x64xf32> to vector<64x64xf32>
      %42 = arith.mulf %40, %41 : vector<64x64xf32>
      %c24_i32 = arith.constant 24 : i32
      %43 = arith.addi %35, %c24_i32 : i32
      %44 = arith.index_cast %43 : i32 to index
      %c0_27 = arith.constant 0 : index
      %45 = vector.load %arg7[%44, %c0_27] : memref<304x64xf32, #tpu.memory_space<vmem>>, vector<64x64xf32>
      %46 = vector.broadcast %16 : vector<1x64xf32> to vector<64x64xf32>
      %47 = arith.mulf %45, %46 : vector<64x64xf32>
      %48 = arith.addf %42, %47 : vector<64x64xf32>
      %c40_i32 = arith.constant 40 : i32
      %49 = arith.addi %35, %c40_i32 : i32
      %50 = arith.index_cast %49 : i32 to index
      %c0_28 = arith.constant 0 : index
      %51 = vector.load %arg7[%50, %c0_28] : memref<304x64xf32, #tpu.memory_space<vmem>>, vector<64x64xf32>
      %52 = vector.broadcast %19 : vector<1x64xf32> to vector<64x64xf32>
      %53 = arith.mulf %51, %52 : vector<64x64xf32>
      %54 = arith.addf %48, %53 : vector<64x64xf32>
      %55 = arith.addf %37, %54 : vector<64x64xf32>
      %c7_i32 = arith.constant 7 : i32
      %56 = arith.addi %35, %c7_i32 : i32
      %57 = arith.index_cast %56 : i32 to index
      %c0_29 = arith.constant 0 : index
      %58 = vector.load %arg7[%57, %c0_29] : memref<304x64xf32, #tpu.memory_space<vmem>>, vector<64x64xf32>
      %59 = vector.broadcast %12 : vector<1x64xf32> to vector<64x64xf32>
      %60 = arith.mulf %58, %59 : vector<64x64xf32>
      %c23_i32 = arith.constant 23 : i32
      %61 = arith.addi %35, %c23_i32 : i32
      %62 = arith.index_cast %61 : i32 to index
      %c0_30 = arith.constant 0 : index
      %63 = vector.load %arg7[%62, %c0_30] : memref<304x64xf32, #tpu.memory_space<vmem>>, vector<64x64xf32>
      %64 = vector.broadcast %15 : vector<1x64xf32> to vector<64x64xf32>
      %65 = arith.mulf %63, %64 : vector<64x64xf32>
      %66 = arith.addf %60, %65 : vector<64x64xf32>
      %c39_i32 = arith.constant 39 : i32
      %67 = arith.addi %35, %c39_i32 : i32
      %68 = arith.index_cast %67 : i32 to index
      %c0_31 = arith.constant 0 : index
      %69 = vector.load %arg7[%68, %c0_31] : memref<304x64xf32, #tpu.memory_space<vmem>>, vector<64x64xf32>
      %70 = vector.broadcast %18 : vector<1x64xf32> to vector<64x64xf32>
      %71 = arith.mulf %69, %70 : vector<64x64xf32>
      %72 = arith.addf %66, %71 : vector<64x64xf32>
      %73 = vector.broadcast %28 : vector<64x1xf32> to vector<64x64xf32>
      %74 = arith.mulf %72, %73 : vector<64x64xf32>
      %75 = arith.addf %55, %74 : vector<64x64xf32>
      %c9_i32 = arith.constant 9 : i32
      %76 = arith.addi %35, %c9_i32 : i32
      %77 = arith.index_cast %76 : i32 to index
      %c0_32 = arith.constant 0 : index
      %78 = vector.load %arg7[%77, %c0_32] : memref<304x64xf32, #tpu.memory_space<vmem>>, vector<64x64xf32>
      %79 = vector.broadcast %14 : vector<1x64xf32> to vector<64x64xf32>
      %80 = arith.mulf %78, %79 : vector<64x64xf32>
      %c25_i32 = arith.constant 25 : i32
      %81 = arith.addi %35, %c25_i32 : i32
      %82 = arith.index_cast %81 : i32 to index
      %c0_33 = arith.constant 0 : index
      %83 = vector.load %arg7[%82, %c0_33] : memref<304x64xf32, #tpu.memory_space<vmem>>, vector<64x64xf32>
      %84 = vector.broadcast %17 : vector<1x64xf32> to vector<64x64xf32>
      %85 = arith.mulf %83, %84 : vector<64x64xf32>
      %86 = arith.addf %80, %85 : vector<64x64xf32>
      %c41_i32 = arith.constant 41 : i32
      %87 = arith.addi %35, %c41_i32 : i32
      %88 = arith.index_cast %87 : i32 to index
      %c0_34 = arith.constant 0 : index
      %89 = vector.load %arg7[%88, %c0_34] : memref<304x64xf32, #tpu.memory_space<vmem>>, vector<64x64xf32>
      %90 = vector.broadcast %20 : vector<1x64xf32> to vector<64x64xf32>
      %91 = arith.mulf %89, %90 : vector<64x64xf32>
      %92 = arith.addf %86, %91 : vector<64x64xf32>
      %93 = vector.broadcast %32 : vector<64x1xf32> to vector<64x64xf32>
      %94 = arith.mulf %92, %93 : vector<64x64xf32>
      %95 = arith.addf %75, %94 : vector<64x64xf32>
      %c0_35 = arith.constant 0 : index
      %96 = arith.index_cast %35 : i32 to index
      %c0_36 = arith.constant 0 : index
      %97 = vector.load %arg6[%c0_35, %96, %c0_36] : memref<1x256x64xf32, #tpu.memory_space<vmem>>, vector<1x64x64xf32>
      %98 = vector.shape_cast %97 : vector<1x64x64xf32> to vector<64x64xf32>
      %99 = vector.shape_cast %95 : vector<64x64xf32> to vector<1x64x64xf32>
      tpu.vector_store %arg6[%c0_35, %96, %c0_36], %99 {strides = array<i32>} : memref<1x256x64xf32, #tpu.memory_space<vmem>>, vector<1x64x64xf32>,
    }
    %c4_i32_25 = arith.constant 4 : i32
    return
  }
  func.func @transform_0(%arg0: i32) -> (i32, i32, i32) {
    %c0_i32 = arith.constant 0 : i32
    %c0_i32_0 = arith.constant 0 : i32
    %c0_i32_1 = arith.constant 0 : i32
    return %arg0, %c0_i32, %c0_i32_0 : i32, i32, i32
  }
  func.func @transform_1(%arg0: i32) -> (i32, i32) {
    %c0_i32 = arith.constant 0 : i32
    %c0_i32_0 = arith.constant 0 : i32
    %c0_i32_1 = arith.constant 0 : i32
    return %c0_i32, %c0_i32_0 : i32, i32
  }
  func.func @transform_2(%arg0: i32) -> (i32, i32) {
    %c0_i32 = arith.constant 0 : i32
    %c0_i32_0 = arith.constant 0 : i32
    %c0_i32_1 = arith.constant 0 : i32
    return %c0_i32, %c0_i32_0 : i32, i32
  }
  func.func @transform_3(%arg0: i32) -> (i32, i32) {
    %c0_i32 = arith.constant 0 : i32
    %c0_i32_0 = arith.constant 0 : i32
    %c0_i32_1 = arith.constant 0 : i32
    return %c0_i32, %c0_i32_0 : i32, i32
  }
  func.func @transform_4(%arg0: i32) -> (i32, i32) {
    %c0_i32 = arith.constant 0 : i32
    %c0_i32_0 = arith.constant 0 : i32
    %c0_i32_1 = arith.constant 0 : i32
    return %c0_i32, %c0_i32_0 : i32, i32
  }
  func.func @transform_5(%arg0: i32) -> (i32, i32, i32) {
    %c0_i32 = arith.constant 0 : i32
    %c0_i32_0 = arith.constant 0 : i32
    %c0_i32_1 = arith.constant 0 : i32
    return %arg0, %c0_i32, %c0_i32_0 : i32, i32, i32
  }
}

</mosaic_0001>

<llo_original>
// kernel: tpu_custom_call.1
$region0: #{tpu_custom_call.1}
  #allocation0 [shape = 'u32[]', space=smem, size = 0x4, offset = 0x4, fixed_abs, tag = 'smem constant byte address 0x4 - core index']
  #allocation1 [shape = 'u32[72,128]{1,0:T(1,128)}', space=vmem, size = 0x9000, scoped, tag = 'internal scratch']
  #allocation2 [shape = 'f32[304,64]{1,0:T(8,128)}', space=vmem, size = 0x26000, scoped, tag = 'scratch operand']
  %s0 = inlined_call_operand.vmem [shape: f32[2,256,32], index: 0, kind: input, shape index: {}]
  %s1 = inlined_call_operand.vmem [shape: f32[32,64], index: 1, kind: input, shape index: {}]
  %s2 = inlined_call_operand.vmem [shape: f32[1,64], index: 2, kind: input, shape index: {}]
  %s3 = inlined_call_operand.vmem [shape: f32[9,64], index: 3, kind: input, shape index: {}]
  %s4 = inlined_call_operand.vmem [shape: f32[1,64], index: 4, kind: input, shape index: {}]
  %s5 = inlined_call_operand.vmem [shape: f32[2,256,64], index: 5, kind: output, shape index: {}]
  %s6 = sld [smem:[#allocation0]]
  $region60: #{tpu_custom_call.1} parent=0
    _
  %s8 = ssub.s32 1, %s6
  %s9 = scalar_select 0, %s8, %s6
  loop: start=0, step=1, limit=4
  $region2: #{tpu_custom_call.1} parent=0 // loop_pre_header
    _
  $region3: #{tpu_custom_call.1} parent=0 // loop_header
    %s11 = sphi 0, %s15
    %p12 = scmp.ge.s32.totalorder %s11, 4
    %s21 = sphi 0, %s23
    %s24 = sphi 0, %s21
    %s25 = sphi 0, %s24
    %s41 = sphi 0, %s25
    %s45 = sphi 0, %s45
    %s47 = sphi 0, %s45
    %s48 = sphi 0, %s47
    %s62 = sphi 0, %s48
    %s66 = sphi 0, %s66
    %s68 = sphi 0, %s66
    %s69 = sphi 0, %s68
    %s83 = sphi 0, %s69
    %s87 = sphi 0, %s87
    %s89 = sphi 0, %s87
    %s90 = sphi 0, %s89
    %s104 = sphi 0, %s90
    %s108 = sphi 0, %s108
    %s110 = sphi 0, %s108
    %s111 = sphi 0, %s110
    %s125 = sphi 0, %s111
    %s131 = sphi 0, %s133
    %s134 = sphi 0, %s131
    %s135 = sphi 0, %s134
    %s151 = sphi 0, %s135
  $region4: #{tpu_custom_call.1} parent=0 // loop_header_branch
    %14 = sbr.rel (%p12) target = $region8
  $region5: #{tpu_custom_call.1} parent=0 // loop_body
    %s16 = ssub.s32 %s11, 1
    %s17 = ssub.s32 %s11, 2
    %s18 = sadd.s32 %s11, 1
    %s19 = ssub.s32 %s11, %s18
    %p20 = scmp.eq.s32.totalorder %s19, 0
    %s22 = sadd.s32 %s21, 1
    %s23 = scalar_select %p20, %s21, %s22
    %p26 = pneg %p20
    %p27 = scmp.eq.s32.totalorder %s11, 1
    %p28 = por %p26, %p27
    %p29 = scmp.ne.s32.totalorder %s21, %s24
    %p30 = scmp.eq.s32.totalorder %s11, 0
    %p31 = por %p29, %p30
    %p32 = scmp.ne.s32.totalorder %s21, %s24
    %p33 = scmp.eq.s32.totalorder %s16, 1
    %p34 = por %p32, %p33
    %p35 = scmp.ne.s32.totalorder %s24, %s25
    %p36 = scmp.eq.s32.totalorder %s16, 0
    %p37 = por %p35, %p36
    %p38 = scmp.ne.s32.totalorder %s24, %s25
    %p39 = scmp.eq.s32.totalorder %s17, 1
    %p40 = por %p38, %p39
    %p42 = scmp.ne.s32.totalorder %s25, %s41
    %p43 = scmp.eq.s32.totalorder %s17, 0
    %p44 = por %p42, %p43
    %s46 = sadd.s32 %s45, 1
    %p49 = scmp.eq.s32.totalorder %s11, 1
    %p50 = scmp.ne.s32.totalorder %s45, %s47
    %p51 = scmp.eq.s32.totalorder %s11, 0
    %p52 = por %p50, %p51
    %p53 = scmp.ne.s32.totalorder %s45, %s47
    %p54 = scmp.eq.s32.totalorder %s16, 1
    %p55 = por %p53, %p54
    %p56 = scmp.ne.s32.totalorder %s47, %s48
    %p57 = scmp.eq.s32.totalorder %s16, 0
    %p58 = por %p56, %p57
    %p59 = scmp.ne.s32.totalorder %s47, %s48
    %p60 = scmp.eq.s32.totalorder %s17, 1
    %p61 = por %p59, %p60
    %p63 = scmp.ne.s32.totalorder %s48, %s62
    %p64 = scmp.eq.s32.totalorder %s17, 0
    %p65 = por %p63, %p64
    %s67 = sadd.s32 %s66, 1
    %p70 = scmp.eq.s32.totalorder %s11, 1
    %p71 = scmp.ne.s32.totalorder %s66, %s68
    %p72 = scmp.eq.s32.totalorder %s11, 0
    %p73 = por %p71, %p72
    %p74 = scmp.ne.s32.totalorder %s66, %s68
    %p75 = scmp.eq.s32.totalorder %s16, 1
    %p76 = por %p74, %p75
    %p77 = scmp.ne.s32.totalorder %s68, %s69
    %p78 = scmp.eq.s32.totalorder %s16, 0
    %p79 = por %p77, %p78
    %p80 = scmp.ne.s32.totalorder %s68, %s69
    %p81 = scmp.eq.s32.totalorder %s17, 1
    %p82 = por %p80, %p81
    %p84 = scmp.ne.s32.totalorder %s69, %s83
    %p85 = scmp.eq.s32.totalorder %s17, 0
    %p86 = por %p84, %p85
    %s88 = sadd.s32 %s87, 1
    %p91 = scmp.eq.s32.totalorder %s11, 1
    %p92 = scmp.ne.s32.totalorder %s87, %s89
    %p93 = scmp.eq.s32.totalorder %s11, 0
    %p94 = por %p92, %p93
    %p95 = scmp.ne.s32.totalorder %s87, %s89
    %p96 = scmp.eq.s32.totalorder %s16, 1
    %p97 = por %p95, %p96
    %p98 = scmp.ne.s32.totalorder %s89, %s90
    %p99 = scmp.eq.s32.totalorder %s16, 0
    %p100 = por %p98, %p99
    %p101 = scmp.ne.s32.totalorder %s89, %s90
    %p102 = scmp.eq.s32.totalorder %s17, 1
    %p103 = por %p101, %p102
    %p105 = scmp.ne.s32.totalorder %s90, %s104
    %p106 = scmp.eq.s32.totalorder %s17, 0
    %p107 = por %p105, %p106
    %s109 = sadd.s32 %s108, 1
    %p112 = scmp.eq.s32.totalorder %s11, 1
    %p113 = scmp.ne.s32.totalorder %s108, %s110
    %p114 = scmp.eq.s32.totalorder %s11, 0
    %p115 = por %p113, %p114
    %p116 = scmp.ne.s32.totalorder %s108, %s110
    %p117 = scmp.eq.s32.totalorder %s16, 1
    %p118 = por %p116, %p117
    %p119 = scmp.ne.s32.totalorder %s110, %s111
    %p120 = scmp.eq.s32.totalorder %s16, 0
    %p121 = por %p119, %p120
    %p122 = scmp.ne.s32.totalorder %s110, %s111
    %p123 = scmp.eq.s32.totalorder %s17, 1
    %p124 = por %p122, %p123
    %p126 = scmp.ne.s32.totalorder %s111, %s125
    %p127 = scmp.eq.s32.totalorder %s17, 0
    %p128 = por %p126, %p127
    %s129 = ssub.s32 %s11, %s18
    %p130 = scmp.eq.s32.totalorder %s129, 0
    %s132 = sadd.s32 %s131, 1
    %s133 = scalar_select %p130, %s131, %s132
    %p136 = pneg %p130
    %p137 = scmp.eq.s32.totalorder %s11, 1
    %p138 = por %p136, %p137
    %p139 = scmp.ne.s32.totalorder %s131, %s134
    %p140 = scmp.eq.s32.totalorder %s11, 0
    %p141 = por %p139, %p140
    %p142 = scmp.ne.s32.totalorder %s131, %s134
    %p143 = scmp.eq.s32.totalorder %s16, 1
    %p144 = por %p142, %p143
    %p145 = scmp.ne.s32.totalorder %s134, %s135
    %p146 = scmp.eq.s32.totalorder %s16, 0
    %p147 = por %p145, %p146
    %p148 = scmp.ne.s32.totalorder %s134, %s135
    %p149 = scmp.eq.s32.totalorder %s17, 1
    %p150 = por %p148, %p149
    %p152 = scmp.ne.s32.totalorder %s135, %s151
    %p153 = scmp.eq.s32.totalorder %s17, 0
    %p154 = por %p152, %p153
    %p155 = scmp.le.s32.totalorder 1, %s11
    %p156 = scmp.lt.s32.totalorder %s11, 3
    %p157 = pnand %p155, %p156
    %p158 = pneg %p157
    // Predicated region
    $region9: #{tpu_custom_call.1} parent=5 // pred_check
      _
    $region10: #{tpu_custom_call.1} parent=5 // pred_check_branch
      %160 = sbr.rel (%p157) target = $region12
    $region11: #{tpu_custom_call.1} parent=5 // pred_region
      %s161 = ssub.s32 %s11, 1
      // Predicated region
      $region13: #{tpu_custom_call.1} parent=11 // pred_check
        %p162 = pneg %p58
      $region14: #{tpu_custom_call.1} parent=11 // pred_check_branch
        %164 = sbr.rel (%p162) target = $region16
      $region15: #{tpu_custom_call.1} parent=11 // pred_region
        _
      $region16: #{tpu_custom_call.1} parent=11 // pred_fallthru
        _
      // Predicated region
      $region17: #{tpu_custom_call.1} parent=11 // pred_check
        %p165 = pneg %p79
      $region18: #{tpu_custom_call.1} parent=11 // pred_check_branch
        %167 = sbr.rel (%p165) target = $region20
      $region19: #{tpu_custom_call.1} parent=11 // pred_region
        _
      $region20: #{tpu_custom_call.1} parent=11 // pred_fallthru
        _
      // Predicated region
      $region21: #{tpu_custom_call.1} parent=11 // pred_check
        %p168 = pneg %p100
      $region22: #{tpu_custom_call.1} parent=11 // pred_check_branch
        %170 = sbr.rel (%p168) target = $region24
      $region23: #{tpu_custom_call.1} parent=11 // pred_region
        _
      $region24: #{tpu_custom_call.1} parent=11 // pred_fallthru
        _
      // Predicated region
      $region25: #{tpu_custom_call.1} parent=11 // pred_check
        %p171 = pneg %p121
      $region26: #{tpu_custom_call.1} parent=11 // pred_check_branch
        %173 = sbr.rel (%p171) target = $region28
      $region27: #{tpu_custom_call.1} parent=11 // pred_region
        _
      $region28: #{tpu_custom_call.1} parent=11 // pred_fallthru
        _
    $region12: #{tpu_custom_call.1} parent=5 // pred_fallthru
      _
    %p174 = scmp.lt.s32.totalorder %s11, 2
    // Predicated region
    $region29: #{tpu_custom_call.1} parent=5 // pred_check
      %p175 = pneg %p174
    $region30: #{tpu_custom_call.1} parent=5 // pred_check_branch
      %177 = sbr.rel (%p175) target = $region32
    $region31: #{tpu_custom_call.1} parent=5 // pred_region
      // Predicated region
      $region33: #{tpu_custom_call.1} parent=31 // pred_check
        %p178 = pneg %p31
      $region34: #{tpu_custom_call.1} parent=31 // pred_check_branch
        %180 = sbr.rel (%p178) target = $region36
      $region35: #{tpu_custom_call.1} parent=31 // pred_region
        %p181 = scmp.lt.s32.totalorder %s11, 1
        %s182 = scalar_select %p181, %s11, 1
        %s183 = smul.addr %s182, 32
        %s184 = smul.addr %s183, 8
        %s185 = scalar_lea.vmem %s0, %s184
      $region36: #{tpu_custom_call.1} parent=31 // pred_fallthru
        _
    $region32: #{tpu_custom_call.1} parent=5 // pred_fallthru
      _
    %p186 = scmp.le.s32.totalorder 1, %s11
    %p187 = scmp.lt.s32.totalorder %s11, 3
    %p188 = pnand %p186, %p187
    %p189 = pneg %p188
    // Predicated region
    $region37: #{tpu_custom_call.1} parent=5 // pred_check
      _
    $region38: #{tpu_custom_call.1} parent=5 // pred_check_branch
      %191 = sbr.rel (%p188) target = $region40
    $region39: #{tpu_custom_call.1} parent=5 // pred_region
      %s192 = ssub.s32 %s11, 1
      %p193 = scmp.lt.s32.totalorder %s16, 1
      %s194 = scalar_select %p193, %s16, 1
      %s195 = smul.addr %s194, 32
      %s196 = smul.addr %s195, 8
      %s197 = scalar_lea.vmem %s0, %s196
      %p198 = pneg %p37
      %p199 = pneg %p34
      %p200 = pneg %p58
      %p201 = pneg %p55
      %p202 = pneg %p79
      %p203 = pneg %p76
      %p204 = pneg %p100
      %p205 = pneg %p97
      %p206 = pneg %p121
      %p207 = pneg %p118
      %p208 = pneg %p147
      %p209 = pneg %p144
      %p210 = scmp.lt.s32.totalorder %s16, 1
      %s211 = scalar_select %p210, %s16, 1
      %s212 = smul.addr %s211, 32
      %s213 = smul.addr %s212, 8
      %s214 = scalar_lea.vmem %s5, %s213
      %p215 = scmp.lt.s32.totalorder %s16, 1
      %s216 = scalar_select %p215, %s16, 1
      %s217 = smul.addr %s216, 32
      %s218 = smul.addr %s217, 8
      %s219 = scalar_lea.vmem %s0, %s218
      %p220 = scmp.lt.s32.totalorder %s16, 1
      %s221 = scalar_select %p220, %s16, 1
      %s222 = smul.addr %s221, 32
      %s223 = smul.addr %s222, 8
      %s224 = scalar_lea.vmem %s5, %s223
      %vm225 = vcmask 523264
      %226 = vst.msk [vmem:[#allocation2] sm:$0xff] %vm225, 0.0
      %227 = vst.msk [vmem:[#allocation2 + $0x8] sm:$0xff] %vm225, 0.0
      %228 = vst.msk [vmem:[#allocation2 + $0x10] sm:$0xff] %vm225, 0.0
      %229 = vst.msk [vmem:[#allocation2 + $0x118] sm:$0xff] %vm225, 0.0
      %230 = vst.msk [vmem:[#allocation2 + $0x120] sm:$0xff] %vm225, 0.0
      %231 = vst.msk [vmem:[#allocation2 + $0x128] sm:$0xff] %vm225, 0.0
      %v232 = vld [vmem:[%s219] sm:$0xff]
      %v233 = vld [vmem:[%s219 + $0x8] sm:$0xff]
      %v234 = vld [vmem:[%s219 + $0x10] sm:$0xff]
      %v235 = vld [vmem:[%s219 + $0x18] sm:$0xff]
      %v236 = vld [vmem:[%s219 + $0x20] sm:$0xff]
      %v237 = vld [vmem:[%s219 + $0x28] sm:$0xff]
      %v238 = vld [vmem:[%s219 + $0x30] sm:$0xff]
      %v239 = vld [vmem:[%s219 + $0x38] sm:$0xff]
      %v240 = vld [vmem:[%s219 + $0x40] sm:$0xff]
      %v241 = vld [vmem:[%s219 + $0x48] sm:$0xff]
      %v242 = vld [vmem:[%s219 + $0x50] sm:$0xff]
      %v243 = vld [vmem:[%s219 + $0x58] sm:$0xff]
      %v244 = vld [vmem:[%s219 + $0x60] sm:$0xff]
      %v245 = vld [vmem:[%s219 + $0x68] sm:$0xff]
      %v246 = vld [vmem:[%s219 + $0x70] sm:$0xff]
      %v247 = vld [vmem:[%s219 + $0x78] sm:$0xff]
      %v248 = vld [vmem:[%s219 + $0x80] sm:$0xff]
      %v249 = vld [vmem:[%s219 + $0x88] sm:$0xff]
      %v250 = vld [vmem:[%s219 + $0x90] sm:$0xff]
      %v251 = vld [vmem:[%s219 + $0x98] sm:$0xff]
      %v252 = vld [vmem:[%s219 + $0xa0] sm:$0xff]
      %v253 = vld [vmem:[%s219 + $0xa8] sm:$0xff]
      %v254 = vld [vmem:[%s219 + $0xb0] sm:$0xff]
      %v255 = vld [vmem:[%s219 + $0xb8] sm:$0xff]
      %v256 = vld [vmem:[%s219 + $0xc0] sm:$0xff]
      %v257 = vld [vmem:[%s219 + $0xc8] sm:$0xff]
      %v258 = vld [vmem:[%s219 + $0xd0] sm:$0xff]
      %v259 = vld [vmem:[%s219 + $0xd8] sm:$0xff]
      %v260 = vld [vmem:[%s219 + $0xe0] sm:$0xff]
      %v261 = vld [vmem:[%s219 + $0xe8] sm:$0xff]
      %v262 = vld [vmem:[%s219 + $0xf0] sm:$0xff]
      %v263 = vld [vmem:[%s219 + $0xf8] sm:$0xff]
      %v264 = vld [vmem:[%s1] sm:$0xff]
      %v265 = vld [vmem:[%s1 + $0x8] sm:$0xff]
      %v266 = vld [vmem:[%s1 + $0x10] sm:$0xff]
      %v267 = vld [vmem:[%s1 + $0x18] sm:$0xff]
      %v268 = vld [vmem:[%s2] sm:$0x1]
      %v270 = vperm.slane %v268, 0
      %vm272 = vcmask 261120
      %v274 = vsel %vm272, %v232, 0
      %v277 = vsel %vm272, %v233, 0
      %v280 = vsel %vm272, %v234, 0
      %v283 = vsel %vm272, %v235, 0
      %v286 = vsel %vm272, %v236, 0
      %v289 = vsel %vm272, %v237, 0
      %v292 = vsel %vm272, %v238, 0
      %v295 = vsel %vm272, %v239, 0
      %v298 = vsel %vm272, %v240, 0
      %v301 = vsel %vm272, %v241, 0
      %v304 = vsel %vm272, %v242, 0
      %v307 = vsel %vm272, %v243, 0
      %v310 = vsel %vm272, %v244, 0
      %v313 = vsel %vm272, %v245, 0
      %v316 = vsel %vm272, %v246, 0
      %v319 = vsel %vm272, %v247, 0
      %v322 = vsel %vm272, %v248, 0
      %v325 = vsel %vm272, %v249, 0
      %v328 = vsel %vm272, %v250, 0
      %v331 = vsel %vm272, %v251, 0
      %v334 = vsel %vm272, %v252, 0
      %v337 = vsel %vm272, %v253, 0
      %v340 = vsel %vm272, %v254, 0
      %v343 = vsel %vm272, %v255, 0
      %v346 = vsel %vm272, %v256, 0
      %v349 = vsel %vm272, %v257, 0
      %v352 = vsel %vm272, %v258, 0
      %v355 = vsel %vm272, %v259, 0
      %v358 = vsel %vm272, %v260, 0
      %v361 = vsel %vm272, %v261, 0
      %v364 = vsel %vm272, %v262, 0
      %v367 = vsel %vm272, %v263, 0
      %369 = vmatpush.msra.mxu0 0.0
      %370 = vmatpush.msra.mxu0 0.0
      %371 = vmatpush.msra.mxu0 0.0
      %372 = vmatpush.msra.mxu0 0.0
      %373 = vmatpush.msra.mxu0 0.0
      %374 = vmatpush.msra.mxu0 0.0
      %375 = vmatpush.msra.mxu0 0.0
      %376 = vmatpush.msra.mxu0 0.0
      %377 = vmatpush.msra.mxu0 0.0
      %378 = vmatpush.msra.mxu0 0.0
      %379 = vmatpush.msra.mxu0 0.0
      %380 = vmatpush.msra.mxu0 0.0
      %v381 = vand.u32 %v267, 4294901760
      %382 = vmatpush.msra.mxu0 %v381
      %v383 = vand.u32 %v266, 4294901760
      %384 = vmatpush.msra.mxu0 %v383
      %v385 = vand.u32 %v265, 4294901760
      %386 = vmatpush.msra.mxu0 %v385
      %v387 = vand.u32 %v264, 4294901760
      %388 = vmatpush.msra.mxu0 %v387
      %v389 = vand.u32 %v274, 4294901760
      %v390 = vsub.f32 %v274, %v389
      %v391 = vand.u32 %v390, 4294901760
      %v392 = vsub.f32 %v390, %v391
      %v393 = vand.u32 %v392, 4294901760
      %394 = vmatmul.f32.gmra.mxu0 %v393
      %v395 = vpop.f32.mrf.mxu0
      %v396 = vadd.f32 %v270, %v395
      %v397 = vand.u32 %v277, 4294901760
      %v398 = vsub.f32 %v277, %v397
      %v399 = vand.u32 %v398, 4294901760
      %v400 = vsub.f32 %v398, %v399
      %v401 = vand.u32 %v400, 4294901760
      %402 = vmatmul.f32.gmra.mxu0 %v401
      %v403 = vpop.f32.mrf.mxu0
      %v404 = vadd.f32 %v270, %v403
      %v405 = vand.u32 %v280, 4294901760
      %v406 = vsub.f32 %v280, %v405
      %v407 = vand.u32 %v406, 4294901760
      %v408 = vsub.f32 %v406, %v407
      %v409 = vand.u32 %v408, 4294901760
      %410 = vmatmul.f32.gmra.mxu0 %v409
      %v411 = vpop.f32.mrf.mxu0
      %v412 = vadd.f32 %v270, %v411
      %v413 = vand.u32 %v283, 4294901760
      %v414 = vsub.f32 %v283, %v413
      %v415 = vand.u32 %v414, 4294901760
      %v416 = vsub.f32 %v414, %v415
      %v417 = vand.u32 %v416, 4294901760
      %418 = vmatmul.f32.gmra.mxu0 %v417
      %v419 = vpop.f32.mrf.mxu0
      %v420 = vadd.f32 %v270, %v419
      %v421 = vand.u32 %v286, 4294901760
      %v422 = vsub.f32 %v286, %v421
      %v423 = vand.u32 %v422, 4294901760
      %v424 = vsub.f32 %v422, %v423
      %v425 = vand.u32 %v424, 4294901760
      %426 = vmatmul.f32.gmra.mxu0 %v425
      %v427 = vpop.f32.mrf.mxu0
      %v428 = vadd.f32 %v270, %v427
      %v429 = vand.u32 %v289, 4294901760
      %v430 = vsub.f32 %v289, %v429
      %v431 = vand.u32 %v430, 4294901760
      %v432 = vsub.f32 %v430, %v431
      %v433 = vand.u32 %v432, 4294901760
      %434 = vmatmul.f32.gmra.mxu0 %v433
      %v435 = vpop.f32.mrf.mxu0
      %v436 = vadd.f32 %v270, %v435
      %v437 = vand.u32 %v292, 4294901760
      %v438 = vsub.f32 %v292, %v437
      %v439 = vand.u32 %v438, 4294901760
      %v440 = vsub.f32 %v438, %v439
      %v441 = vand.u32 %v440, 4294901760
      %442 = vmatmul.f32.gmra.mxu0 %v441
      %v443 = vpop.f32.mrf.mxu0
      %v444 = vadd.f32 %v270, %v443
      %v445 = vand.u32 %v295, 4294901760
      %v446 = vsub.f32 %v295, %v445
      %v447 = vand.u32 %v446, 4294901760
      %v448 = vsub.f32 %v446, %v447
      %v449 = vand.u32 %v448, 4294901760
      %450 = vmatmul.f32.gmra.mxu0 %v449
      %v451 = vpop.f32.mrf.mxu0
      %v452 = vadd.f32 %v270, %v451
      %v453 = vand.u32 %v298, 4294901760
      %v454 = vsub.f32 %v298, %v453
      %v455 = vand.u32 %v454, 4294901760
      %v456 = vsub.f32 %v454, %v455
      %v457 = vand.u32 %v456, 4294901760
      %458 = vmatmul.f32.gmra.mxu0 %v457
      %v459 = vpop.f32.mrf.mxu0
      %v460 = vadd.f32 %v270, %v459
      %v461 = vand.u32 %v301, 4294901760
      %v462 = vsub.f32 %v301, %v461
      %v463 = vand.u32 %v462, 4294901760
      %v464 = vsub.f32 %v462, %v463
      %v465 = vand.u32 %v464, 4294901760
      %466 = vmatmul.f32.gmra.mxu0 %v465
      %v467 = vpop.f32.mrf.mxu0
      %v468 = vadd.f32 %v270, %v467
      %v469 = vand.u32 %v304, 4294901760
      %v470 = vsub.f32 %v304, %v469
      %v471 = vand.u32 %v470, 4294901760
      %v472 = vsub.f32 %v470, %v471
      %v473 = vand.u32 %v472, 4294901760
      %474 = vmatmul.f32.gmra.mxu0 %v473
      %v475 = vpop.f32.mrf.mxu0
      %v476 = vadd.f32 %v270, %v475
      %v477 = vand.u32 %v307, 4294901760
      %v478 = vsub.f32 %v307, %v477
      %v479 = vand.u32 %v478, 4294901760
      %v480 = vsub.f32 %v478, %v479
      %v481 = vand.u32 %v480, 4294901760
      %482 = vmatmul.f32.gmra.mxu0 %v481
      %v483 = vpop.f32.mrf.mxu0
      %v484 = vadd.f32 %v270, %v483
      %v485 = vand.u32 %v310, 4294901760
      %v486 = vsub.f32 %v310, %v485
      %v487 = vand.u32 %v486, 4294901760
      %v488 = vsub.f32 %v486, %v487
      %v489 = vand.u32 %v488, 4294901760
      %490 = vmatmul.f32.gmra.mxu0 %v489
      %v491 = vpop.f32.mrf.mxu0
      %v492 = vadd.f32 %v270, %v491
      %v493 = vand.u32 %v313, 4294901760
      %v494 = vsub.f32 %v313, %v493
      %v495 = vand.u32 %v494, 4294901760
      %v496 = vsub.f32 %v494, %v495
      %v497 = vand.u32 %v496, 4294901760
      %498 = vmatmul.f32.gmra.mxu0 %v497
      %v499 = vpop.f32.mrf.mxu0
      %v500 = vadd.f32 %v270, %v499
      %v501 = vand.u32 %v316, 4294901760
      %v502 = vsub.f32 %v316, %v501
      %v503 = vand.u32 %v502, 4294901760
      %v504 = vsub.f32 %v502, %v503
      %v505 = vand.u32 %v504, 4294901760
      %506 = vmatmul.f32.gmra.mxu0 %v505
      %v507 = vpop.f32.mrf.mxu0
      %v508 = vadd.f32 %v270, %v507
      %v509 = vand.u32 %v319, 4294901760
      %v510 = vsub.f32 %v319, %v509
      %v511 = vand.u32 %v510, 4294901760
      %v512 = vsub.f32 %v510, %v511
      %v513 = vand.u32 %v512, 4294901760
      %514 = vmatmul.f32.gmra.mxu0 %v513
      %v515 = vpop.f32.mrf.mxu0
      %v516 = vadd.f32 %v270, %v515
      %v517 = vand.u32 %v322, 4294901760
      %v518 = vsub.f32 %v322, %v517
      %v519 = vand.u32 %v518, 4294901760
      %v520 = vsub.f32 %v518, %v519
      %v521 = vand.u32 %v520, 4294901760
      %522 = vmatmul.f32.gmra.mxu0 %v521
      %v523 = vpop.f32.mrf.mxu0
      %v524 = vadd.f32 %v270, %v523
      %v525 = vand.u32 %v325, 4294901760
      %v526 = vsub.f32 %v325, %v525
      %v527 = vand.u32 %v526, 4294901760
      %v528 = vsub.f32 %v526, %v527
      %v529 = vand.u32 %v528, 4294901760
      %530 = vmatmul.f32.gmra.mxu0 %v529
      %v531 = vpop.f32.mrf.mxu0
      %v532 = vadd.f32 %v270, %v531
      %v533 = vand.u32 %v328, 4294901760
      %v534 = vsub.f32 %v328, %v533
      %v535 = vand.u32 %v534, 4294901760
      %v536 = vsub.f32 %v534, %v535
      %v537 = vand.u32 %v536, 4294901760
      %538 = vmatmul.f32.gmra.mxu0 %v537
      %v539 = vpop.f32.mrf.mxu0
      %v540 = vadd.f32 %v270, %v539
      %v541 = vand.u32 %v331, 4294901760
      %v542 = vsub.f32 %v331, %v541
      %v543 = vand.u32 %v542, 4294901760
      %v544 = vsub.f32 %v542, %v543
      %v545 = vand.u32 %v544, 4294901760
      %546 = vmatmul.f32.gmra.mxu0 %v545
      %v547 = vpop.f32.mrf.mxu0
      %v548 = vadd.f32 %v270, %v547
      %v549 = vand.u32 %v334, 4294901760
      %v550 = vsub.f32 %v334, %v549
      %v551 = vand.u32 %v550, 4294901760
      %v552 = vsub.f32 %v550, %v551
      %v553 = vand.u32 %v552, 4294901760
      %554 = vmatmul.f32.gmra.mxu0 %v553
      %v555 = vpop.f32.mrf.mxu0
      %v556 = vadd.f32 %v270, %v555
      %v557 = vand.u32 %v337, 4294901760
      %v558 = vsub.f32 %v337, %v557
      %v559 = vand.u32 %v558, 4294901760
      %v560 = vsub.f32 %v558, %v559
      %v561 = vand.u32 %v560, 4294901760
      %562 = vmatmul.f32.gmra.mxu0 %v561
      %v563 = vpop.f32.mrf.mxu0
      %v564 = vadd.f32 %v270, %v563
      %v565 = vand.u32 %v340, 4294901760
      %v566 = vsub.f32 %v340, %v565
      %v567 = vand.u32 %v566, 4294901760
      %v568 = vsub.f32 %v566, %v567
      %v569 = vand.u32 %v568, 4294901760
      %570 = vmatmul.f32.gmra.mxu0 %v569
      %v571 = vpop.f32.mrf.mxu0
      %v572 = vadd.f32 %v270, %v571
      %v573 = vand.u32 %v343, 4294901760
      %v574 = vsub.f32 %v343, %v573
      %v575 = vand.u32 %v574, 4294901760
      %v576 = vsub.f32 %v574, %v575
      %v577 = vand.u32 %v576, 4294901760
      %578 = vmatmul.f32.gmra.mxu0 %v577
      %v579 = vpop.f32.mrf.mxu0
      %v580 = vadd.f32 %v270, %v579
      %v581 = vand.u32 %v346, 4294901760
      %v582 = vsub.f32 %v346, %v581
      %v583 = vand.u32 %v582, 4294901760
      %v584 = vsub.f32 %v582, %v583
      %v585 = vand.u32 %v584, 4294901760
      %586 = vmatmul.f32.gmra.mxu0 %v585
      %v587 = vpop.f32.mrf.mxu0
      %v588 = vadd.f32 %v270, %v587
      %v589 = vand.u32 %v349, 4294901760
      %v590 = vsub.f32 %v349, %v589
      %v591 = vand.u32 %v590, 4294901760
      %v592 = vsub.f32 %v590, %v591
      %v593 = vand.u32 %v592, 4294901760
      %594 = vmatmul.f32.gmra.mxu0 %v593
      %v595 = vpop.f32.mrf.mxu0
      %v596 = vadd.f32 %v270, %v595
      %v597 = vand.u32 %v352, 4294901760
      %v598 = vsub.f32 %v352, %v597
      %v599 = vand.u32 %v598, 4294901760
      %v600 = vsub.f32 %v598, %v599
      %v601 = vand.u32 %v600, 4294901760
      %602 = vmatmul.f32.gmra.mxu0 %v601
      %v603 = vpop.f32.mrf.mxu0
      %v604 = vadd.f32 %v270, %v603
      %v605 = vand.u32 %v355, 4294901760
      %v606 = vsub.f32 %v355, %v605
      %v607 = vand.u32 %v606, 4294901760
      %v608 = vsub.f32 %v606, %v607
      %v609 = vand.u32 %v608, 4294901760
      %610 = vmatmul.f32.gmra.mxu0 %v609
      %v611 = vpop.f32.mrf.mxu0
      %v612 = vadd.f32 %v270, %v611
      %v613 = vand.u32 %v358, 4294901760
      %v614 = vsub.f32 %v358, %v613
      %v615 = vand.u32 %v614, 4294901760
      %v616 = vsub.f32 %v614, %v615
      %v617 = vand.u32 %v616, 4294901760
      %618 = vmatmul.f32.gmra.mxu0 %v617
      %v619 = vpop.f32.mrf.mxu0
      %v620 = vadd.f32 %v270, %v619
      %v621 = vand.u32 %v361, 4294901760
      %v622 = vsub.f32 %v361, %v621
      %v623 = vand.u32 %v622, 4294901760
      %v624 = vsub.f32 %v622, %v623
      %v625 = vand.u32 %v624, 4294901760
      %626 = vmatmul.f32.gmra.mxu0 %v625
      %v627 = vpop.f32.mrf.mxu0
      %v628 = vadd.f32 %v270, %v627
      %v629 = vand.u32 %v364, 4294901760
      %v630 = vsub.f32 %v364, %v629
      %v631 = vand.u32 %v630, 4294901760
      %v632 = vsub.f32 %v630, %v631
      %v633 = vand.u32 %v632, 4294901760
      %634 = vmatmul.f32.gmra.mxu0 %v633
      %v635 = vpop.f32.mrf.mxu0
      %v636 = vadd.f32 %v270, %v635
      %v637 = vand.u32 %v367, 4294901760
      %v638 = vsub.f32 %v367, %v637
      %v639 = vand.u32 %v638, 4294901760
      %v640 = vsub.f32 %v638, %v639
      %v641 = vand.u32 %v640, 4294901760
      %642 = vmatmul.f32.gmra.mxu0 %v641
      %v643 = vpop.f32.mrf.mxu0
      %v644 = vadd.f32 %v270, %v643
      %645 = vdwg.mxu0
      %646 = vmatpush.msra.mxu0 0.0
      %647 = vmatpush.msra.mxu0 0.0
      %648 = vmatpush.msra.mxu0 0.0
      %649 = vmatpush.msra.mxu0 0.0
      %650 = vmatpush.msra.mxu0 0.0
      %651 = vmatpush.msra.mxu0 0.0
      %652 = vmatpush.msra.mxu0 0.0
      %653 = vmatpush.msra.mxu0 0.0
      %654 = vmatpush.msra.mxu0 0.0
      %655 = vmatpush.msra.mxu0 0.0
      %656 = vmatpush.msra.mxu0 0.0
      %657 = vmatpush.msra.mxu0 0.0
      %v658 = vand.u32 %v267, 4294901760
      %v659 = vsub.f32 %v267, %v658
      %v660 = vand.u32 %v659, 4294901760
      %v661 = vsub.f32 %v659, %v660
      %v662 = vand.u32 %v661, 4294901760
      %663 = vmatpush.msra.mxu0 %v662
      %v664 = vand.u32 %v266, 4294901760
      %v665 = vsub.f32 %v266, %v664
      %v666 = vand.u32 %v665, 4294901760
      %v667 = vsub.f32 %v665, %v666
      %v668 = vand.u32 %v667, 4294901760
      %669 = vmatpush.msra.mxu0 %v668
      %v670 = vand.u32 %v265, 4294901760
      %v671 = vsub.f32 %v265, %v670
      %v672 = vand.u32 %v671, 4294901760
      %v673 = vsub.f32 %v671, %v672
      %v674 = vand.u32 %v673, 4294901760
      %675 = vmatpush.msra.mxu0 %v674
      %v676 = vand.u32 %v264, 4294901760
      %v677 = vsub.f32 %v264, %v676
      %v678 = vand.u32 %v677, 4294901760
      %v679 = vsub.f32 %v677, %v678
      %v680 = vand.u32 %v679, 4294901760
      %681 = vmatpush.msra.mxu0 %v680
      %v682 = vand.u32 %v274, 4294901760
      %683 = vmatmul.f32.gmra.mxu0 %v682
      %v684 = vpop.f32.mrf.mxu0
      %v685 = vadd.f32 %v396, %v684
      %v686 = vand.u32 %v277, 4294901760
      %687 = vmatmul.f32.gmra.mxu0 %v686
      %v688 = vpop.f32.mrf.mxu0
      %v689 = vadd.f32 %v404, %v688
      %v690 = vand.u32 %v280, 4294901760
      %691 = vmatmul.f32.gmra.mxu0 %v690
      %v692 = vpop.f32.mrf.mxu0
      %v693 = vadd.f32 %v412, %v692
      %v694 = vand.u32 %v283, 4294901760
      %695 = vmatmul.f32.gmra.mxu0 %v694
      %v696 = vpop.f32.mrf.mxu0
      %v697 = vadd.f32 %v420, %v696
      %v698 = vand.u32 %v286, 4294901760
      %699 = vmatmul.f32.gmra.mxu0 %v698
      %v700 = vpop.f32.mrf.mxu0
      %v701 = vadd.f32 %v428, %v700
      %v702 = vand.u32 %v289, 4294901760
      %703 = vmatmul.f32.gmra.mxu0 %v702
      %v704 = vpop.f32.mrf.mxu0
      %v705 = vadd.f32 %v436, %v704
      %v706 = vand.u32 %v292, 4294901760
      %707 = vmatmul.f32.gmra.mxu0 %v706
      %v708 = vpop.f32.mrf.mxu0
      %v709 = vadd.f32 %v444, %v708
      %v710 = vand.u32 %v295, 4294901760
      %711 = vmatmul.f32.gmra.mxu0 %v710
      %v712 = vpop.f32.mrf.mxu0
      %v713 = vadd.f32 %v452, %v712
      %v714 = vand.u32 %v298, 4294901760
      %715 = vmatmul.f32.gmra.mxu0 %v714
      %v716 = vpop.f32.mrf.mxu0
      %v717 = vadd.f32 %v460, %v716
      %v718 = vand.u32 %v301, 4294901760
      %719 = vmatmul.f32.gmra.mxu0 %v718
      %v720 = vpop.f32.mrf.mxu0
      %v721 = vadd.f32 %v468, %v720
      %v722 = vand.u32 %v304, 4294901760
      %723 = vmatmul.f32.gmra.mxu0 %v722
      %v724 = vpop.f32.mrf.mxu0
      %v725 = vadd.f32 %v476, %v724
      %v726 = vand.u32 %v307, 4294901760
      %727 = vmatmul.f32.gmra.mxu0 %v726
      %v728 = vpop.f32.mrf.mxu0
      %v729 = vadd.f32 %v484, %v728
      %v730 = vand.u32 %v310, 4294901760
      %731 = vmatmul.f32.gmra.mxu0 %v730
      %v732 = vpop.f32.mrf.mxu0
      %v733 = vadd.f32 %v492, %v732
      %v734 = vand.u32 %v313, 4294901760
      %735 = vmatmul.f32.gmra.mxu0 %v734
      %v736 = vpop.f32.mrf.mxu0
      %v737 = vadd.f32 %v500, %v736
      %v738 = vand.u32 %v316, 4294901760
      %739 = vmatmul.f32.gmra.mxu0 %v738
      %v740 = vpop.f32.mrf.mxu0
      %v741 = vadd.f32 %v508, %v740
      %v742 = vand.u32 %v319, 4294901760
      %743 = vmatmul.f32.gmra.mxu0 %v742
      %v744 = vpop.f32.mrf.mxu0
      %v745 = vadd.f32 %v516, %v744
      %v746 = vand.u32 %v322, 4294901760
      %747 = vmatmul.f32.gmra.mxu0 %v746
      %v748 = vpop.f32.mrf.mxu0
      %v749 = vadd.f32 %v524, %v748
      %v750 = vand.u32 %v325, 4294901760
      %751 = vmatmul.f32.gmra.mxu0 %v750
      %v752 = vpop.f32.mrf.mxu0
      %v753 = vadd.f32 %v532, %v752
      %v754 = vand.u32 %v328, 4294901760
      %755 = vmatmul.f32.gmra.mxu0 %v754
      %v756 = vpop.f32.mrf.mxu0
      %v757 = vadd.f32 %v540, %v756
      %v758 = vand.u32 %v331, 4294901760
      %759 = vmatmul.f32.gmra.mxu0 %v758
      %v760 = vpop.f32.mrf.mxu0
      %v761 = vadd.f32 %v548, %v760
      %v762 = vand.u32 %v334, 4294901760
      %763 = vmatmul.f32.gmra.mxu0 %v762
      %v764 = vpop.f32.mrf.mxu0
      %v765 = vadd.f32 %v556, %v764
      %v766 = vand.u32 %v337, 4294901760
      %767 = vmatmul.f32.gmra.mxu0 %v766
      %v768 = vpop.f32.mrf.mxu0
      %v769 = vadd.f32 %v564, %v768
      %v770 = vand.u32 %v340, 4294901760
      %771 = vmatmul.f32.gmra.mxu0 %v770
      %v772 = vpop.f32.mrf.mxu0
      %v773 = vadd.f32 %v572, %v772
      %v774 = vand.u32 %v343, 4294901760
      %775 = vmatmul.f32.gmra.mxu0 %v774
      %v776 = vpop.f32.mrf.mxu0
      %v777 = vadd.f32 %v580, %v776
      %v778 = vand.u32 %v346, 4294901760
      %779 = vmatmul.f32.gmra.mxu0 %v778
      %v780 = vpop.f32.mrf.mxu0
      %v781 = vadd.f32 %v588, %v780
      %v782 = vand.u32 %v349, 4294901760
      %783 = vmatmul.f32.gmra.mxu0 %v782
      %v784 = vpop.f32.mrf.mxu0
      %v785 = vadd.f32 %v596, %v784
      %v786 = vand.u32 %v352, 4294901760
      %787 = vmatmul.f32.gmra.mxu0 %v786
      %v788 = vpop.f32.mrf.mxu0
      %v789 = vadd.f32 %v604, %v788
      %v790 = vand.u32 %v355, 4294901760
      %791 = vmatmul.f32.gmra.mxu0 %v790
      %v792 = vpop.f32.mrf.mxu0
      %v793 = vadd.f32 %v612, %v792
      %v794 = vand.u32 %v358, 4294901760
      %795 = vmatmul.f32.gmra.mxu0 %v794
      %v796 = vpop.f32.mrf.mxu0
      %v797 = vadd.f32 %v620, %v796
      %v798 = vand.u32 %v361, 4294901760
      %799 = vmatmul.f32.gmra.mxu0 %v798
      %v800 = vpop.f32.mrf.mxu0
      %v801 = vadd.f32 %v628, %v800
      %v802 = vand.u32 %v364, 4294901760
      %803 = vmatmul.f32.gmra.mxu0 %v802
      %v804 = vpop.f32.mrf.mxu0
      %v805 = vadd.f32 %v636, %v804
      %v806 = vand.u32 %v367, 4294901760
      %807 = vmatmul.f32.gmra.mxu0 %v806
      %v808 = vpop.f32.mrf.mxu0
      %v809 = vadd.f32 %v644, %v808
      %810 = vdwg.mxu0
      %811 = vmatpush.msra.mxu0 0.0
      %812 = vmatpush.msra.mxu0 0.0
      %813 = vmatpush.msra.mxu0 0.0
      %814 = vmatpush.msra.mxu0 0.0
      %815 = vmatpush.msra.mxu0 0.0
      %816 = vmatpush.msra.mxu0 0.0
      %817 = vmatpush.msra.mxu0 0.0
      %818 = vmatpush.msra.mxu0 0.0
      %819 = vmatpush.msra.mxu0 0.0
      %820 = vmatpush.msra.mxu0 0.0
      %821 = vmatpush.msra.mxu0 0.0
      %822 = vmatpush.msra.mxu0 0.0
      %v823 = vand.u32 %v267, 4294901760
      %v824 = vsub.f32 %v267, %v823
      %825 = vmatpush.msra.mxu0 %v824
      %v826 = vand.u32 %v266, 4294901760
      %v827 = vsub.f32 %v266, %v826
      %828 = vmatpush.msra.mxu0 %v827
      %v829 = vand.u32 %v265, 4294901760
      %v830 = vsub.f32 %v265, %v829
      %831 = vmatpush.msra.mxu0 %v830
      %v832 = vand.u32 %v264, 4294901760
      %v833 = vsub.f32 %v264, %v832
      %834 = vmatpush.msra.mxu0 %v833
      %v835 = vand.u32 %v274, 4294901760
      %v836 = vsub.f32 %v274, %v835
      %837 = vmatmul.f32.gmra.mxu0 %v836
      %v838 = vpop.f32.mrf.mxu0
      %v839 = vadd.f32 %v685, %v838
      %v840 = vand.u32 %v277, 4294901760
      %v841 = vsub.f32 %v277, %v840
      %842 = vmatmul.f32.gmra.mxu0 %v841
      %v843 = vpop.f32.mrf.mxu0
      %v844 = vadd.f32 %v689, %v843
      %v845 = vand.u32 %v280, 4294901760
      %v846 = vsub.f32 %v280, %v845
      %847 = vmatmul.f32.gmra.mxu0 %v846
      %v848 = vpop.f32.mrf.mxu0
      %v849 = vadd.f32 %v693, %v848
      %v850 = vand.u32 %v283, 4294901760
      %v851 = vsub.f32 %v283, %v850
      %852 = vmatmul.f32.gmra.mxu0 %v851
      %v853 = vpop.f32.mrf.mxu0
      %v854 = vadd.f32 %v697, %v853
      %v855 = vand.u32 %v286, 4294901760
      %v856 = vsub.f32 %v286, %v855
      %857 = vmatmul.f32.gmra.mxu0 %v856
      %v858 = vpop.f32.mrf.mxu0
      %v859 = vadd.f32 %v701, %v858
      %v860 = vand.u32 %v289, 4294901760
      %v861 = vsub.f32 %v289, %v860
      %862 = vmatmul.f32.gmra.mxu0 %v861
      %v863 = vpop.f32.mrf.mxu0
      %v864 = vadd.f32 %v705, %v863
      %v865 = vand.u32 %v292, 4294901760
      %v866 = vsub.f32 %v292, %v865
      %867 = vmatmul.f32.gmra.mxu0 %v866
      %v868 = vpop.f32.mrf.mxu0
      %v869 = vadd.f32 %v709, %v868
      %v870 = vand.u32 %v295, 4294901760
      %v871 = vsub.f32 %v295, %v870
      %872 = vmatmul.f32.gmra.mxu0 %v871
      %v873 = vpop.f32.mrf.mxu0
      %v874 = vadd.f32 %v713, %v873
      %v875 = vand.u32 %v298, 4294901760
      %v876 = vsub.f32 %v298, %v875
      %877 = vmatmul.f32.gmra.mxu0 %v876
      %v878 = vpop.f32.mrf.mxu0
      %v879 = vadd.f32 %v717, %v878
      %v880 = vand.u32 %v301, 4294901760
      %v881 = vsub.f32 %v301, %v880
      %882 = vmatmul.f32.gmra.mxu0 %v881
      %v883 = vpop.f32.mrf.mxu0
      %v884 = vadd.f32 %v721, %v883
      %v885 = vand.u32 %v304, 4294901760
      %v886 = vsub.f32 %v304, %v885
      %887 = vmatmul.f32.gmra.mxu0 %v886
      %v888 = vpop.f32.mrf.mxu0
      %v889 = vadd.f32 %v725, %v888
      %v890 = vand.u32 %v307, 4294901760
      %v891 = vsub.f32 %v307, %v890
      %892 = vmatmul.f32.gmra.mxu0 %v891
      %v893 = vpop.f32.mrf.mxu0
      %v894 = vadd.f32 %v729, %v893
      %v895 = vand.u32 %v310, 4294901760
      %v896 = vsub.f32 %v310, %v895
      %897 = vmatmul.f32.gmra.mxu0 %v896
      %v898 = vpop.f32.mrf.mxu0
      %v899 = vadd.f32 %v733, %v898
      %v900 = vand.u32 %v313, 4294901760
      %v901 = vsub.f32 %v313, %v900
      %902 = vmatmul.f32.gmra.mxu0 %v901
      %v903 = vpop.f32.mrf.mxu0
      %v904 = vadd.f32 %v737, %v903
      %v905 = vand.u32 %v316, 4294901760
      %v906 = vsub.f32 %v316, %v905
      %907 = vmatmul.f32.gmra.mxu0 %v906
      %v908 = vpop.f32.mrf.mxu0
      %v909 = vadd.f32 %v741, %v908
      %v910 = vand.u32 %v319, 4294901760
      %v911 = vsub.f32 %v319, %v910
      %912 = vmatmul.f32.gmra.mxu0 %v911
      %v913 = vpop.f32.mrf.mxu0
      %v914 = vadd.f32 %v745, %v913
      %v915 = vand.u32 %v322, 4294901760
      %v916 = vsub.f32 %v322, %v915
      %917 = vmatmul.f32.gmra.mxu0 %v916
      %v918 = vpop.f32.mrf.mxu0
      %v919 = vadd.f32 %v749, %v918
      %v920 = vand.u32 %v325, 4294901760
      %v921 = vsub.f32 %v325, %v920
      %922 = vmatmul.f32.gmra.mxu0 %v921
      %v923 = vpop.f32.mrf.mxu0
      %v924 = vadd.f32 %v753, %v923
      %v925 = vand.u32 %v328, 4294901760
      %v926 = vsub.f32 %v328, %v925
      %927 = vmatmul.f32.gmra.mxu0 %v926
      %v928 = vpop.f32.mrf.mxu0
      %v929 = vadd.f32 %v757, %v928
      %v930 = vand.u32 %v331, 4294901760
      %v931 = vsub.f32 %v331, %v930
      %932 = vmatmul.f32.gmra.mxu0 %v931
      %v933 = vpop.f32.mrf.mxu0
      %v934 = vadd.f32 %v761, %v933
      %v935 = vand.u32 %v334, 4294901760
      %v936 = vsub.f32 %v334, %v935
      %937 = vmatmul.f32.gmra.mxu0 %v936
      %v938 = vpop.f32.mrf.mxu0
      %v939 = vadd.f32 %v765, %v938
      %v940 = vand.u32 %v337, 4294901760
      %v941 = vsub.f32 %v337, %v940
      %942 = vmatmul.f32.gmra.mxu0 %v941
      %v943 = vpop.f32.mrf.mxu0
      %v944 = vadd.f32 %v769, %v943
      %v945 = vand.u32 %v340, 4294901760
      %v946 = vsub.f32 %v340, %v945
      %947 = vmatmul.f32.gmra.mxu0 %v946
      %v948 = vpop.f32.mrf.mxu0
      %v949 = vadd.f32 %v773, %v948
      %v950 = vand.u32 %v343, 4294901760
      %v951 = vsub.f32 %v343, %v950
      %952 = vmatmul.f32.gmra.mxu0 %v951
      %v953 = vpop.f32.mrf.mxu0
      %v954 = vadd.f32 %v777, %v953
      %v955 = vand.u32 %v346, 4294901760
      %v956 = vsub.f32 %v346, %v955
      %957 = vmatmul.f32.gmra.mxu0 %v956
      %v958 = vpop.f32.mrf.mxu0
      %v959 = vadd.f32 %v781, %v958
      %v960 = vand.u32 %v349, 4294901760
      %v961 = vsub.f32 %v349, %v960
      %962 = vmatmul.f32.gmra.mxu0 %v961
      %v963 = vpop.f32.mrf.mxu0
      %v964 = vadd.f32 %v785, %v963
      %v965 = vand.u32 %v352, 4294901760
      %v966 = vsub.f32 %v352, %v965
      %967 = vmatmul.f32.gmra.mxu0 %v966
      %v968 = vpop.f32.mrf.mxu0
      %v969 = vadd.f32 %v789, %v968
      %v970 = vand.u32 %v355, 4294901760
      %v971 = vsub.f32 %v355, %v970
      %972 = vmatmul.f32.gmra.mxu0 %v971
      %v973 = vpop.f32.mrf.mxu0
      %v974 = vadd.f32 %v793, %v973
      %v975 = vand.u32 %v358, 4294901760
      %v976 = vsub.f32 %v358, %v975
      %977 = vmatmul.f32.gmra.mxu0 %v976
      %v978 = vpop.f32.mrf.mxu0
      %v979 = vadd.f32 %v797, %v978
      %v980 = vand.u32 %v361, 4294901760
      %v981 = vsub.f32 %v361, %v980
      %982 = vmatmul.f32.gmra.mxu0 %v981
      %v983 = vpop.f32.mrf.mxu0
      %v984 = vadd.f32 %v801, %v983
      %v985 = vand.u32 %v364, 4294901760
      %v986 = vsub.f32 %v364, %v985
      %987 = vmatmul.f32.gmra.mxu0 %v986
      %v988 = vpop.f32.mrf.mxu0
      %v989 = vadd.f32 %v805, %v988
      %v990 = vand.u32 %v367, 4294901760
      %v991 = vsub.f32 %v367, %v990
      %992 = vmatmul.f32.gmra.mxu0 %v991
      %v993 = vpop.f32.mrf.mxu0
      %v994 = vadd.f32 %v809, %v993
      %995 = vdwg.mxu0
      %996 = vmatpush.msra.mxu0 0.0
      %997 = vmatpush.msra.mxu0 0.0
      %998 = vmatpush.msra.mxu0 0.0
      %999 = vmatpush.msra.mxu0 0.0
      %1000 = vmatpush.msra.mxu0 0.0
      %1001 = vmatpush.msra.mxu0 0.0
      %1002 = vmatpush.msra.mxu0 0.0
      %1003 = vmatpush.msra.mxu0 0.0
      %1004 = vmatpush.msra.mxu0 0.0
      %1005 = vmatpush.msra.mxu0 0.0
      %1006 = vmatpush.msra.mxu0 0.0
      %1007 = vmatpush.msra.mxu0 0.0
      %v1008 = vand.u32 %v267, 4294901760
      %1009 = vmatpush.msra.mxu0 %v1008
      %v1010 = vand.u32 %v266, 4294901760
      %1011 = vmatpush.msra.mxu0 %v1010
      %v1012 = vand.u32 %v265, 4294901760
      %1013 = vmatpush.msra.mxu0 %v1012
      %v1014 = vand.u32 %v264, 4294901760
      %1015 = vmatpush.msra.mxu0 %v1014
      %v1016 = vand.u32 %v274, 4294901760
      %v1017 = vsub.f32 %v274, %v1016
      %v1018 = vand.u32 %v1017, 4294901760
      %1019 = vmatmul.f32.gmra.mxu0 %v1018
      %v1020 = vpop.f32.mrf.mxu0
      %v1021 = vadd.f32 %v839, %v1020
      %v1022 = vand.u32 %v277, 4294901760
      %v1023 = vsub.f32 %v277, %v1022
      %v1024 = vand.u32 %v1023, 4294901760
      %1025 = vmatmul.f32.gmra.mxu0 %v1024
      %v1026 = vpop.f32.mrf.mxu0
      %v1027 = vadd.f32 %v844, %v1026
      %v1028 = vand.u32 %v280, 4294901760
      %v1029 = vsub.f32 %v280, %v1028
      %v1030 = vand.u32 %v1029, 4294901760
      %1031 = vmatmul.f32.gmra.mxu0 %v1030
      %v1032 = vpop.f32.mrf.mxu0
      %v1033 = vadd.f32 %v849, %v1032
      %v1034 = vand.u32 %v283, 4294901760
      %v1035 = vsub.f32 %v283, %v1034
      %v1036 = vand.u32 %v1035, 4294901760
      %1037 = vmatmul.f32.gmra.mxu0 %v1036
      %v1038 = vpop.f32.mrf.mxu0
      %v1039 = vadd.f32 %v854, %v1038
      %v1040 = vand.u32 %v286, 4294901760
      %v1041 = vsub.f32 %v286, %v1040
      %v1042 = vand.u32 %v1041, 4294901760
      %1043 = vmatmul.f32.gmra.mxu0 %v1042
      %v1044 = vpop.f32.mrf.mxu0
      %v1045 = vadd.f32 %v859, %v1044
      %v1046 = vand.u32 %v289, 4294901760
      %v1047 = vsub.f32 %v289, %v1046
      %v1048 = vand.u32 %v1047, 4294901760
      %1049 = vmatmul.f32.gmra.mxu0 %v1048
      %v1050 = vpop.f32.mrf.mxu0
      %v1051 = vadd.f32 %v864, %v1050
      %v1052 = vand.u32 %v292, 4294901760
      %v1053 = vsub.f32 %v292, %v1052
      %v1054 = vand.u32 %v1053, 4294901760
      %1055 = vmatmul.f32.gmra.mxu0 %v1054
      %v1056 = vpop.f32.mrf.mxu0
      %v1057 = vadd.f32 %v869, %v1056
      %v1058 = vand.u32 %v295, 4294901760
      %v1059 = vsub.f32 %v295, %v1058
      %v1060 = vand.u32 %v1059, 4294901760
      %1061 = vmatmul.f32.gmra.mxu0 %v1060
      %v1062 = vpop.f32.mrf.mxu0
      %v1063 = vadd.f32 %v874, %v1062
      %v1064 = vand.u32 %v298, 4294901760
      %v1065 = vsub.f32 %v298, %v1064
      %v1066 = vand.u32 %v1065, 4294901760
      %1067 = vmatmul.f32.gmra.mxu0 %v1066
      %v1068 = vpop.f32.mrf.mxu0
      %v1069 = vadd.f32 %v879, %v1068
      %v1070 = vand.u32 %v301, 4294901760
      %v1071 = vsub.f32 %v301, %v1070
      %v1072 = vand.u32 %v1071, 4294901760
      %1073 = vmatmul.f32.gmra.mxu0 %v1072
      %v1074 = vpop.f32.mrf.mxu0
      %v1075 = vadd.f32 %v884, %v1074
      %v1076 = vand.u32 %v304, 4294901760
      %v1077 = vsub.f32 %v304, %v1076
      %v1078 = vand.u32 %v1077, 4294901760
      %1079 = vmatmul.f32.gmra.mxu0 %v1078
      %v1080 = vpop.f32.mrf.mxu0
      %v1081 = vadd.f32 %v889, %v1080
      %v1082 = vand.u32 %v307, 4294901760
      %v1083 = vsub.f32 %v307, %v1082
      %v1084 = vand.u32 %v1083, 4294901760
      %1085 = vmatmul.f32.gmra.mxu0 %v1084
      %v1086 = vpop.f32.mrf.mxu0
      %v1087 = vadd.f32 %v894, %v1086
      %v1088 = vand.u32 %v310, 4294901760
      %v1089 = vsub.f32 %v310, %v1088
      %v1090 = vand.u32 %v1089, 4294901760
      %1091 = vmatmul.f32.gmra.mxu0 %v1090
      %v1092 = vpop.f32.mrf.mxu0
      %v1093 = vadd.f32 %v899, %v1092
      %v1094 = vand.u32 %v313, 4294901760
      %v1095 = vsub.f32 %v313, %v1094
      %v1096 = vand.u32 %v1095, 4294901760
      %1097 = vmatmul.f32.gmra.mxu0 %v1096
      %v1098 = vpop.f32.mrf.mxu0
      %v1099 = vadd.f32 %v904, %v1098
      %v1100 = vand.u32 %v316, 4294901760
      %v1101 = vsub.f32 %v316, %v1100
      %v1102 = vand.u32 %v1101, 4294901760
      %1103 = vmatmul.f32.gmra.mxu0 %v1102
      %v1104 = vpop.f32.mrf.mxu0
      %v1105 = vadd.f32 %v909, %v1104
      %v1106 = vand.u32 %v319, 4294901760
      %v1107 = vsub.f32 %v319, %v1106
      %v1108 = vand.u32 %v1107, 4294901760
      %1109 = vmatmul.f32.gmra.mxu0 %v1108
      %v1110 = vpop.f32.mrf.mxu0
      %v1111 = vadd.f32 %v914, %v1110
      %v1112 = vand.u32 %v322, 4294901760
      %v1113 = vsub.f32 %v322, %v1112
      %v1114 = vand.u32 %v1113, 4294901760
      %1115 = vmatmul.f32.gmra.mxu0 %v1114
      %v1116 = vpop.f32.mrf.mxu0
      %v1117 = vadd.f32 %v919, %v1116
      %v1118 = vand.u32 %v325, 4294901760
      %v1119 = vsub.f32 %v325, %v1118
      %v1120 = vand.u32 %v1119, 4294901760
      %1121 = vmatmul.f32.gmra.mxu0 %v1120
      %v1122 = vpop.f32.mrf.mxu0
      %v1123 = vadd.f32 %v924, %v1122
      %v1124 = vand.u32 %v328, 4294901760
      %v1125 = vsub.f32 %v328, %v1124
      %v1126 = vand.u32 %v1125, 4294901760
      %1127 = vmatmul.f32.gmra.mxu0 %v1126
      %v1128 = vpop.f32.mrf.mxu0
      %v1129 = vadd.f32 %v929, %v1128
      %v1130 = vand.u32 %v331, 4294901760
      %v1131 = vsub.f32 %v331, %v1130
      %v1132 = vand.u32 %v1131, 4294901760
      %1133 = vmatmul.f32.gmra.mxu0 %v1132
      %v1134 = vpop.f32.mrf.mxu0
      %v1135 = vadd.f32 %v934, %v1134
      %v1136 = vand.u32 %v334, 4294901760
      %v1137 = vsub.f32 %v334, %v1136
      %v1138 = vand.u32 %v1137, 4294901760
      %1139 = vmatmul.f32.gmra.mxu0 %v1138
      %v1140 = vpop.f32.mrf.mxu0
      %v1141 = vadd.f32 %v939, %v1140
      %v1142 = vand.u32 %v337, 4294901760
      %v1143 = vsub.f32 %v337, %v1142
      %v1144 = vand.u32 %v1143, 4294901760
      %1145 = vmatmul.f32.gmra.mxu0 %v1144
      %v1146 = vpop.f32.mrf.mxu0
      %v1147 = vadd.f32 %v944, %v1146
      %v1148 = vand.u32 %v340, 4294901760
      %v1149 = vsub.f32 %v340, %v1148
      %v1150 = vand.u32 %v1149, 4294901760
      %1151 = vmatmul.f32.gmra.mxu0 %v1150
      %v1152 = vpop.f32.mrf.mxu0
      %v1153 = vadd.f32 %v949, %v1152
      %v1154 = vand.u32 %v343, 4294901760
      %v1155 = vsub.f32 %v343, %v1154
      %v1156 = vand.u32 %v1155, 4294901760
      %1157 = vmatmul.f32.gmra.mxu0 %v1156
      %v1158 = vpop.f32.mrf.mxu0
      %v1159 = vadd.f32 %v954, %v1158
      %v1160 = vand.u32 %v346, 4294901760
      %v1161 = vsub.f32 %v346, %v1160
      %v1162 = vand.u32 %v1161, 4294901760
      %1163 = vmatmul.f32.gmra.mxu0 %v1162
      %v1164 = vpop.f32.mrf.mxu0
      %v1165 = vadd.f32 %v959, %v1164
      %v1166 = vand.u32 %v349, 4294901760
      %v1167 = vsub.f32 %v349, %v1166
      %v1168 = vand.u32 %v1167, 4294901760
      %1169 = vmatmul.f32.gmra.mxu0 %v1168
      %v1170 = vpop.f32.mrf.mxu0
      %v1171 = vadd.f32 %v964, %v1170
      %v1172 = vand.u32 %v352, 4294901760
      %v1173 = vsub.f32 %v352, %v1172
      %v1174 = vand.u32 %v1173, 4294901760
      %1175 = vmatmul.f32.gmra.mxu0 %v1174
      %v1176 = vpop.f32.mrf.mxu0
      %v1177 = vadd.f32 %v969, %v1176
      %v1178 = vand.u32 %v355, 4294901760
      %v1179 = vsub.f32 %v355, %v1178
      %v1180 = vand.u32 %v1179, 4294901760
      %1181 = vmatmul.f32.gmra.mxu0 %v1180
      %v1182 = vpop.f32.mrf.mxu0
      %v1183 = vadd.f32 %v974, %v1182
      %v1184 = vand.u32 %v358, 4294901760
      %v1185 = vsub.f32 %v358, %v1184
      %v1186 = vand.u32 %v1185, 4294901760
      %1187 = vmatmul.f32.gmra.mxu0 %v1186
      %v1188 = vpop.f32.mrf.mxu0
      %v1189 = vadd.f32 %v979, %v1188
      %v1190 = vand.u32 %v361, 4294901760
      %v1191 = vsub.f32 %v361, %v1190
      %v1192 = vand.u32 %v1191, 4294901760
      %1193 = vmatmul.f32.gmra.mxu0 %v1192
      %v1194 = vpop.f32.mrf.mxu0
      %v1195 = vadd.f32 %v984, %v1194
      %v1196 = vand.u32 %v364, 4294901760
      %v1197 = vsub.f32 %v364, %v1196
      %v1198 = vand.u32 %v1197, 4294901760
      %1199 = vmatmul.f32.gmra.mxu0 %v1198
      %v1200 = vpop.f32.mrf.mxu0
      %v1201 = vadd.f32 %v989, %v1200
      %v1202 = vand.u32 %v367, 4294901760
      %v1203 = vsub.f32 %v367, %v1202
      %v1204 = vand.u32 %v1203, 4294901760
      %1205 = vmatmul.f32.gmra.mxu0 %v1204
      %v1206 = vpop.f32.mrf.mxu0
      %v1207 = vadd.f32 %v994, %v1206
      %1208 = vdwg.mxu0
      %1209 = vmatpush.msra.mxu0 0.0
      %1210 = vmatpush.msra.mxu0 0.0
      %1211 = vmatpush.msra.mxu0 0.0
      %1212 = vmatpush.msra.mxu0 0.0
      %1213 = vmatpush.msra.mxu0 0.0
      %1214 = vmatpush.msra.mxu0 0.0
      %1215 = vmatpush.msra.mxu0 0.0
      %1216 = vmatpush.msra.mxu0 0.0
      %1217 = vmatpush.msra.mxu0 0.0
      %1218 = vmatpush.msra.mxu0 0.0
      %1219 = vmatpush.msra.mxu0 0.0
      %1220 = vmatpush.msra.mxu0 0.0
      %v1221 = vand.u32 %v267, 4294901760
      %v1222 = vsub.f32 %v267, %v1221
      %v1223 = vand.u32 %v1222, 4294901760
      %1224 = vmatpush.msra.mxu0 %v1223
      %v1225 = vand.u32 %v266, 4294901760
      %v1226 = vsub.f32 %v266, %v1225
      %v1227 = vand.u32 %v1226, 4294901760
      %1228 = vmatpush.msra.mxu0 %v1227
      %v1229 = vand.u32 %v265, 4294901760
      %v1230 = vsub.f32 %v265, %v1229
      %v1231 = vand.u32 %v1230, 4294901760
      %1232 = vmatpush.msra.mxu0 %v1231
      %v1233 = vand.u32 %v264, 4294901760
      %v1234 = vsub.f32 %v264, %v1233
      %v1235 = vand.u32 %v1234, 4294901760
      %1236 = vmatpush.msra.mxu0 %v1235
      %v1237 = vand.u32 %v274, 4294901760
      %1238 = vmatmul.f32.gmra.mxu0 %v1237
      %v1239 = vpop.f32.mrf.mxu0
      %v1240 = vadd.f32 %v1021, %v1239
      %v1241 = vand.u32 %v277, 4294901760
      %1242 = vmatmul.f32.gmra.mxu0 %v1241
      %v1243 = vpop.f32.mrf.mxu0
      %v1244 = vadd.f32 %v1027, %v1243
      %v1245 = vand.u32 %v280, 4294901760
      %1246 = vmatmul.f32.gmra.mxu0 %v1245
      %v1247 = vpop.f32.mrf.mxu0
      %v1248 = vadd.f32 %v1033, %v1247
      %v1249 = vand.u32 %v283, 4294901760
      %1250 = vmatmul.f32.gmra.mxu0 %v1249
      %v1251 = vpop.f32.mrf.mxu0
      %v1252 = vadd.f32 %v1039, %v1251
      %v1253 = vand.u32 %v286, 4294901760
      %1254 = vmatmul.f32.gmra.mxu0 %v1253
      %v1255 = vpop.f32.mrf.mxu0
      %v1256 = vadd.f32 %v1045, %v1255
      %v1257 = vand.u32 %v289, 4294901760
      %1258 = vmatmul.f32.gmra.mxu0 %v1257
      %v1259 = vpop.f32.mrf.mxu0
      %v1260 = vadd.f32 %v1051, %v1259
      %v1261 = vand.u32 %v292, 4294901760
      %1262 = vmatmul.f32.gmra.mxu0 %v1261
      %v1263 = vpop.f32.mrf.mxu0
      %v1264 = vadd.f32 %v1057, %v1263
      %v1265 = vand.u32 %v295, 4294901760
      %1266 = vmatmul.f32.gmra.mxu0 %v1265
      %v1267 = vpop.f32.mrf.mxu0
      %v1268 = vadd.f32 %v1063, %v1267
      %v1269 = vand.u32 %v298, 4294901760
      %1270 = vmatmul.f32.gmra.mxu0 %v1269
      %v1271 = vpop.f32.mrf.mxu0
      %v1272 = vadd.f32 %v1069, %v1271
      %v1273 = vand.u32 %v301, 4294901760
      %1274 = vmatmul.f32.gmra.mxu0 %v1273
      %v1275 = vpop.f32.mrf.mxu0
      %v1276 = vadd.f32 %v1075, %v1275
      %v1277 = vand.u32 %v304, 4294901760
      %1278 = vmatmul.f32.gmra.mxu0 %v1277
      %v1279 = vpop.f32.mrf.mxu0
      %v1280 = vadd.f32 %v1081, %v1279
      %v1281 = vand.u32 %v307, 4294901760
      %1282 = vmatmul.f32.gmra.mxu0 %v1281
      %v1283 = vpop.f32.mrf.mxu0
      %v1284 = vadd.f32 %v1087, %v1283
      %v1285 = vand.u32 %v310, 4294901760
      %1286 = vmatmul.f32.gmra.mxu0 %v1285
      %v1287 = vpop.f32.mrf.mxu0
      %v1288 = vadd.f32 %v1093, %v1287
      %v1289 = vand.u32 %v313, 4294901760
      %1290 = vmatmul.f32.gmra.mxu0 %v1289
      %v1291 = vpop.f32.mrf.mxu0
      %v1292 = vadd.f32 %v1099, %v1291
      %v1293 = vand.u32 %v316, 4294901760
      %1294 = vmatmul.f32.gmra.mxu0 %v1293
      %v1295 = vpop.f32.mrf.mxu0
      %v1296 = vadd.f32 %v1105, %v1295
      %v1297 = vand.u32 %v319, 4294901760
      %1298 = vmatmul.f32.gmra.mxu0 %v1297
      %v1299 = vpop.f32.mrf.mxu0
      %v1300 = vadd.f32 %v1111, %v1299
      %v1301 = vand.u32 %v322, 4294901760
      %1302 = vmatmul.f32.gmra.mxu0 %v1301
      %v1303 = vpop.f32.mrf.mxu0
      %v1304 = vadd.f32 %v1117, %v1303
      %v1305 = vand.u32 %v325, 4294901760
      %1306 = vmatmul.f32.gmra.mxu0 %v1305
      %v1307 = vpop.f32.mrf.mxu0
      %v1308 = vadd.f32 %v1123, %v1307
      %v1309 = vand.u32 %v328, 4294901760
      %1310 = vmatmul.f32.gmra.mxu0 %v1309
      %v1311 = vpop.f32.mrf.mxu0
      %v1312 = vadd.f32 %v1129, %v1311
      %v1313 = vand.u32 %v331, 4294901760
      %1314 = vmatmul.f32.gmra.mxu0 %v1313
      %v1315 = vpop.f32.mrf.mxu0
      %v1316 = vadd.f32 %v1135, %v1315
      %v1317 = vand.u32 %v334, 4294901760
      %1318 = vmatmul.f32.gmra.mxu0 %v1317
      %v1319 = vpop.f32.mrf.mxu0
      %v1320 = vadd.f32 %v1141, %v1319
      %v1321 = vand.u32 %v337, 4294901760
      %1322 = vmatmul.f32.gmra.mxu0 %v1321
      %v1323 = vpop.f32.mrf.mxu0
      %v1324 = vadd.f32 %v1147, %v1323
      %v1325 = vand.u32 %v340, 4294901760
      %1326 = vmatmul.f32.gmra.mxu0 %v1325
      %v1327 = vpop.f32.mrf.mxu0
      %v1328 = vadd.f32 %v1153, %v1327
      %v1329 = vand.u32 %v343, 4294901760
      %1330 = vmatmul.f32.gmra.mxu0 %v1329
      %v1331 = vpop.f32.mrf.mxu0
      %v1332 = vadd.f32 %v1159, %v1331
      %v1333 = vand.u32 %v346, 4294901760
      %1334 = vmatmul.f32.gmra.mxu0 %v1333
      %v1335 = vpop.f32.mrf.mxu0
      %v1336 = vadd.f32 %v1165, %v1335
      %v1337 = vand.u32 %v349, 4294901760
      %1338 = vmatmul.f32.gmra.mxu0 %v1337
      %v1339 = vpop.f32.mrf.mxu0
      %v1340 = vadd.f32 %v1171, %v1339
      %v1341 = vand.u32 %v352, 4294901760
      %1342 = vmatmul.f32.gmra.mxu0 %v1341
      %v1343 = vpop.f32.mrf.mxu0
      %v1344 = vadd.f32 %v1177, %v1343
      %v1345 = vand.u32 %v355, 4294901760
      %1346 = vmatmul.f32.gmra.mxu0 %v1345
      %v1347 = vpop.f32.mrf.mxu0
      %v1348 = vadd.f32 %v1183, %v1347
      %v1349 = vand.u32 %v358, 4294901760
      %1350 = vmatmul.f32.gmra.mxu0 %v1349
      %v1351 = vpop.f32.mrf.mxu0
      %v1352 = vadd.f32 %v1189, %v1351
      %v1353 = vand.u32 %v361, 4294901760
      %1354 = vmatmul.f32.gmra.mxu0 %v1353
      %v1355 = vpop.f32.mrf.mxu0
      %v1356 = vadd.f32 %v1195, %v1355
      %v1357 = vand.u32 %v364, 4294901760
      %1358 = vmatmul.f32.gmra.mxu0 %v1357
      %v1359 = vpop.f32.mrf.mxu0
      %v1360 = vadd.f32 %v1201, %v1359
      %v1361 = vand.u32 %v367, 4294901760
      %1362 = vmatmul.f32.gmra.mxu0 %v1361
      %v1363 = vpop.f32.mrf.mxu0
      %v1364 = vadd.f32 %v1207, %v1363
      %1365 = vdwg.mxu0
      %1366 = vmatpush.msra.mxu0 0.0
      %1367 = vmatpush.msra.mxu0 0.0
      %1368 = vmatpush.msra.mxu0 0.0
      %1369 = vmatpush.msra.mxu0 0.0
      %1370 = vmatpush.msra.mxu0 0.0
      %1371 = vmatpush.msra.mxu0 0.0
      %1372 = vmatpush.msra.mxu0 0.0
      %1373 = vmatpush.msra.mxu0 0.0
      %1374 = vmatpush.msra.mxu0 0.0
      %1375 = vmatpush.msra.mxu0 0.0
      %1376 = vmatpush.msra.mxu0 0.0
      %1377 = vmatpush.msra.mxu0 0.0
      %v1378 = vand.u32 %v267, 4294901760
      %1379 = vmatpush.msra.mxu0 %v1378
      %v1380 = vand.u32 %v266, 4294901760
      %1381 = vmatpush.msra.mxu0 %v1380
      %v1382 = vand.u32 %v265, 4294901760
      %1383 = vmatpush.msra.mxu0 %v1382
      %v1384 = vand.u32 %v264, 4294901760
      %1385 = vmatpush.msra.mxu0 %v1384
      %v1386 = vand.u32 %v274, 4294901760
      %1387 = vmatmul.f32.gmra.mxu0 %v1386
      %v1388 = vpop.f32.mrf.mxu0
      %v1389 = vadd.f32 %v1240, %v1388
      %v1390 = vand.u32 %v277, 4294901760
      %1391 = vmatmul.f32.gmra.mxu0 %v1390
      %v1392 = vpop.f32.mrf.mxu0
      %v1393 = vadd.f32 %v1244, %v1392
      %v1394 = vand.u32 %v280, 4294901760
      %1395 = vmatmul.f32.gmra.mxu0 %v1394
      %v1396 = vpop.f32.mrf.mxu0
      %v1397 = vadd.f32 %v1248, %v1396
      %v1398 = vand.u32 %v283, 4294901760
      %1399 = vmatmul.f32.gmra.mxu0 %v1398
      %v1400 = vpop.f32.mrf.mxu0
      %v1401 = vadd.f32 %v1252, %v1400
      %v1402 = vand.u32 %v286, 4294901760
      %1403 = vmatmul.f32.gmra.mxu0 %v1402
      %v1404 = vpop.f32.mrf.mxu0
      %v1405 = vadd.f32 %v1256, %v1404
      %v1406 = vand.u32 %v289, 4294901760
      %1407 = vmatmul.f32.gmra.mxu0 %v1406
      %v1408 = vpop.f32.mrf.mxu0
      %v1409 = vadd.f32 %v1260, %v1408
      %v1410 = vand.u32 %v292, 4294901760
      %1411 = vmatmul.f32.gmra.mxu0 %v1410
      %v1412 = vpop.f32.mrf.mxu0
      %v1413 = vadd.f32 %v1264, %v1412
      %v1414 = vand.u32 %v295, 4294901760
      %1415 = vmatmul.f32.gmra.mxu0 %v1414
      %v1416 = vpop.f32.mrf.mxu0
      %v1417 = vadd.f32 %v1268, %v1416
      %v1418 = vand.u32 %v298, 4294901760
      %1419 = vmatmul.f32.gmra.mxu0 %v1418
      %v1420 = vpop.f32.mrf.mxu0
      %v1421 = vadd.f32 %v1272, %v1420
      %v1422 = vand.u32 %v301, 4294901760
      %1423 = vmatmul.f32.gmra.mxu0 %v1422
      %v1424 = vpop.f32.mrf.mxu0
      %v1425 = vadd.f32 %v1276, %v1424
      %v1426 = vand.u32 %v304, 4294901760
      %1427 = vmatmul.f32.gmra.mxu0 %v1426
      %v1428 = vpop.f32.mrf.mxu0
      %v1429 = vadd.f32 %v1280, %v1428
      %v1430 = vand.u32 %v307, 4294901760
      %1431 = vmatmul.f32.gmra.mxu0 %v1430
      %v1432 = vpop.f32.mrf.mxu0
      %v1433 = vadd.f32 %v1284, %v1432
      %v1434 = vand.u32 %v310, 4294901760
      %1435 = vmatmul.f32.gmra.mxu0 %v1434
      %v1436 = vpop.f32.mrf.mxu0
      %v1437 = vadd.f32 %v1288, %v1436
      %v1438 = vand.u32 %v313, 4294901760
      %1439 = vmatmul.f32.gmra.mxu0 %v1438
      %v1440 = vpop.f32.mrf.mxu0
      %v1441 = vadd.f32 %v1292, %v1440
      %v1442 = vand.u32 %v316, 4294901760
      %1443 = vmatmul.f32.gmra.mxu0 %v1442
      %v1444 = vpop.f32.mrf.mxu0
      %v1445 = vadd.f32 %v1296, %v1444
      %v1446 = vand.u32 %v319, 4294901760
      %1447 = vmatmul.f32.gmra.mxu0 %v1446
      %v1448 = vpop.f32.mrf.mxu0
      %v1449 = vadd.f32 %v1300, %v1448
      %v1450 = vand.u32 %v322, 4294901760
      %1451 = vmatmul.f32.gmra.mxu0 %v1450
      %v1452 = vpop.f32.mrf.mxu0
      %v1453 = vadd.f32 %v1304, %v1452
      %v1454 = vand.u32 %v325, 4294901760
      %1455 = vmatmul.f32.gmra.mxu0 %v1454
      %v1456 = vpop.f32.mrf.mxu0
      %v1457 = vadd.f32 %v1308, %v1456
      %v1458 = vand.u32 %v328, 4294901760
      %1459 = vmatmul.f32.gmra.mxu0 %v1458
      %v1460 = vpop.f32.mrf.mxu0
      %v1461 = vadd.f32 %v1312, %v1460
      %v1462 = vand.u32 %v331, 4294901760
      %1463 = vmatmul.f32.gmra.mxu0 %v1462
      %v1464 = vpop.f32.mrf.mxu0
      %v1465 = vadd.f32 %v1316, %v1464
      %v1466 = vand.u32 %v334, 4294901760
      %1467 = vmatmul.f32.gmra.mxu0 %v1466
      %v1468 = vpop.f32.mrf.mxu0
      %v1469 = vadd.f32 %v1320, %v1468
      %v1470 = vand.u32 %v337, 4294901760
      %1471 = vmatmul.f32.gmra.mxu0 %v1470
      %v1472 = vpop.f32.mrf.mxu0
      %v1473 = vadd.f32 %v1324, %v1472
      %v1474 = vand.u32 %v340, 4294901760
      %1475 = vmatmul.f32.gmra.mxu0 %v1474
      %v1476 = vpop.f32.mrf.mxu0
      %v1477 = vadd.f32 %v1328, %v1476
      %v1478 = vand.u32 %v343, 4294901760
      %1479 = vmatmul.f32.gmra.mxu0 %v1478
      %v1480 = vpop.f32.mrf.mxu0
      %v1481 = vadd.f32 %v1332, %v1480
      %v1482 = vand.u32 %v346, 4294901760
      %1483 = vmatmul.f32.gmra.mxu0 %v1482
      %v1484 = vpop.f32.mrf.mxu0
      %v1485 = vadd.f32 %v1336, %v1484
      %v1486 = vand.u32 %v349, 4294901760
      %1487 = vmatmul.f32.gmra.mxu0 %v1486
      %v1488 = vpop.f32.mrf.mxu0
      %v1489 = vadd.f32 %v1340, %v1488
      %v1490 = vand.u32 %v352, 4294901760
      %1491 = vmatmul.f32.gmra.mxu0 %v1490
      %v1492 = vpop.f32.mrf.mxu0
      %v1493 = vadd.f32 %v1344, %v1492
      %v1494 = vand.u32 %v355, 4294901760
      %1495 = vmatmul.f32.gmra.mxu0 %v1494
      %v1496 = vpop.f32.mrf.mxu0
      %v1497 = vadd.f32 %v1348, %v1496
      %v1498 = vand.u32 %v358, 4294901760
      %1499 = vmatmul.f32.gmra.mxu0 %v1498
      %v1500 = vpop.f32.mrf.mxu0
      %v1501 = vadd.f32 %v1352, %v1500
      %v1502 = vand.u32 %v361, 4294901760
      %1503 = vmatmul.f32.gmra.mxu0 %v1502
      %v1504 = vpop.f32.mrf.mxu0
      %v1505 = vadd.f32 %v1356, %v1504
      %v1506 = vand.u32 %v364, 4294901760
      %1507 = vmatmul.f32.gmra.mxu0 %v1506
      %v1508 = vpop.f32.mrf.mxu0
      %v1509 = vadd.f32 %v1360, %v1508
      %v1510 = vand.u32 %v367, 4294901760
      %1511 = vmatmul.f32.gmra.mxu0 %v1510
      %v1512 = vpop.f32.mrf.mxu0
      %v1513 = vadd.f32 %v1364, %v1512
      %1514 = vdwg.mxu0
      %1515 = vst.msk [vmem:[#allocation2 + $0x18] sm:$0xff] %vm225, %v1389
      %1516 = vst.msk [vmem:[#allocation2 + $0x20] sm:$0xff] %vm225, %v1393
      %1517 = vst.msk [vmem:[#allocation2 + $0x28] sm:$0xff] %vm225, %v1397
      %1518 = vst.msk [vmem:[#allocation2 + $0x30] sm:$0xff] %vm225, %v1401
      %1519 = vst.msk [vmem:[#allocation2 + $0x38] sm:$0xff] %vm225, %v1405
      %1520 = vst.msk [vmem:[#allocation2 + $0x40] sm:$0xff] %vm225, %v1409
      %1521 = vst.msk [vmem:[#allocation2 + $0x48] sm:$0xff] %vm225, %v1413
      %1522 = vst.msk [vmem:[#allocation2 + $0x50] sm:$0xff] %vm225, %v1417
      %1523 = vst.msk [vmem:[#allocation2 + $0x58] sm:$0xff] %vm225, %v1421
      %1524 = vst.msk [vmem:[#allocation2 + $0x60] sm:$0xff] %vm225, %v1425
      %1525 = vst.msk [vmem:[#allocation2 + $0x68] sm:$0xff] %vm225, %v1429
      %1526 = vst.msk [vmem:[#allocation2 + $0x70] sm:$0xff] %vm225, %v1433
      %1527 = vst.msk [vmem:[#allocation2 + $0x78] sm:$0xff] %vm225, %v1437
      %1528 = vst.msk [vmem:[#allocation2 + $0x80] sm:$0xff] %vm225, %v1441
      %1529 = vst.msk [vmem:[#allocation2 + $0x88] sm:$0xff] %vm225, %v1445
      %1530 = vst.msk [vmem:[#allocation2 + $0x90] sm:$0xff] %vm225, %v1449
      %1531 = vst.msk [vmem:[#allocation2 + $0x98] sm:$0xff] %vm225, %v1453
      %1532 = vst.msk [vmem:[#allocation2 + $0xa0] sm:$0xff] %vm225, %v1457
      %1533 = vst.msk [vmem:[#allocation2 + $0xa8] sm:$0xff] %vm225, %v1461
      %1534 = vst.msk [vmem:[#allocation2 + $0xb0] sm:$0xff] %vm225, %v1465
      %1535 = vst.msk [vmem:[#allocation2 + $0xb8] sm:$0xff] %vm225, %v1469
      %1536 = vst.msk [vmem:[#allocation2 + $0xc0] sm:$0xff] %vm225, %v1473
      %1537 = vst.msk [vmem:[#allocation2 + $0xc8] sm:$0xff] %vm225, %v1477
      %1538 = vst.msk [vmem:[#allocation2 + $0xd0] sm:$0xff] %vm225, %v1481
      %1539 = vst.msk [vmem:[#allocation2 + $0xd8] sm:$0xff] %vm225, %v1485
      %1540 = vst.msk [vmem:[#allocation2 + $0xe0] sm:$0xff] %vm225, %v1489
      %1541 = vst.msk [vmem:[#allocation2 + $0xe8] sm:$0xff] %vm225, %v1493
      %1542 = vst.msk [vmem:[#allocation2 + $0xf0] sm:$0xff] %vm225, %v1497
      %1543 = vst.msk [vmem:[#allocation2 + $0xf8] sm:$0xff] %vm225, %v1501
      %1544 = vst.msk [vmem:[#allocation2 + $0x100] sm:$0xff] %vm225, %v1505
      %1545 = vst.msk [vmem:[#allocation2 + $0x108] sm:$0xff] %vm225, %v1509
      %1546 = vst.msk [vmem:[#allocation2 + $0x110] sm:$0xff] %vm225, %v1513
      %v1547 = vld [vmem:[%s3] sm:$0x1]
      %v1548 = vld [vmem:[%s3 + $0x1] sm:$0x1]
      %v1549 = vld [vmem:[%s3 + $0x2] sm:$0x1]
      %v1550 = vld [vmem:[%s3 + $0x3] sm:$0x1]
      %v1551 = vld [vmem:[%s3 + $0x4] sm:$0x1]
      %v1552 = vld [vmem:[%s3 + $0x5] sm:$0x1]
      %v1553 = vld [vmem:[%s3 + $0x6] sm:$0x1]
      %v1554 = vld [vmem:[%s3 + $0x7] sm:$0x1]
      %v1555 = vld [vmem:[%s3 + $0x8] sm:$0x1]
      %v1556 = vld [vmem:[%s4] sm:$0x1]
      %v1557 = vlaneseq
      %v1558 = vshrl.u32 %v1557, 7
      %v1559 = vadd.s32 %v1558, 8
      %v1560 = vadd.s32 %v1558, 16
      %v1561 = vadd.s32 %v1558, 24
      %v1562 = vadd.s32 %v1558, 32
      %v1563 = vadd.s32 %v1558, 40
      %v1564 = vadd.s32 %v1558, 48
      %v1565 = vadd.s32 %v1558, 56
      %vm1566 = vcmp.lt.s32.totalorder %v1558, 0
      %v1567 = vsub.s32 0, %v1558
      %v1568 = vsel %vm1566, %v1567, %v1558
      %v1569 = vshrl.u32 %v1568, 4
      %v1570 = vand.u32 %v1568, 15
      %v1571 = vsub.s32 0, %v1570
      %v1572 = vsel %vm1566, %v1571, %v1570
      %vm1573 = vcmp.lt.s32.totalorder %v1559, 0
      %v1574 = vsub.s32 0, %v1559
      %v1575 = vsel %vm1573, %v1574, %v1559
      %v1576 = vshrl.u32 %v1575, 4
      %v1577 = vand.u32 %v1575, 15
      %v1578 = vsub.s32 0, %v1577
      %v1579 = vsel %vm1573, %v1578, %v1577
      %vm1580 = vcmp.lt.s32.totalorder %v1560, 0
      %v1581 = vsub.s32 0, %v1560
      %v1582 = vsel %vm1580, %v1581, %v1560
      %v1583 = vshrl.u32 %v1582, 4
      %v1584 = vand.u32 %v1582, 15
      %v1585 = vsub.s32 0, %v1584
      %v1586 = vsel %vm1580, %v1585, %v1584
      %vm1587 = vcmp.lt.s32.totalorder %v1561, 0
      %v1588 = vsub.s32 0, %v1561
      %v1589 = vsel %vm1587, %v1588, %v1561
      %v1590 = vshrl.u32 %v1589, 4
      %v1591 = vand.u32 %v1589, 15
      %v1592 = vsub.s32 0, %v1591
      %v1593 = vsel %vm1587, %v1592, %v1591
      %vm1594 = vcmp.lt.s32.totalorder %v1562, 0
      %v1595 = vsub.s32 0, %v1562
      %v1596 = vsel %vm1594, %v1595, %v1562
      %v1597 = vshrl.u32 %v1596, 4
      %v1598 = vand.u32 %v1596, 15
      %v1599 = vsub.s32 0, %v1598
      %v1600 = vsel %vm1594, %v1599, %v1598
      %vm1601 = vcmp.lt.s32.totalorder %v1563, 0
      %v1602 = vsub.s32 0, %v1563
      %v1603 = vsel %vm1601, %v1602, %v1563
      %v1604 = vshrl.u32 %v1603, 4
      %v1605 = vand.u32 %v1603, 15
      %v1606 = vsub.s32 0, %v1605
      %v1607 = vsel %vm1601, %v1606, %v1605
      %vm1608 = vcmp.lt.s32.totalorder %v1564, 0
      %v1609 = vsub.s32 0, %v1564
      %v1610 = vsel %vm1608, %v1609, %v1564
      %v1611 = vshrl.u32 %v1610, 4
      %v1612 = vand.u32 %v1610, 15
      %v1613 = vsub.s32 0, %v1612
      %v1614 = vsel %vm1608, %v1613, %v1612
      %vm1615 = vcmp.lt.s32.totalorder %v1565, 0
      %v1616 = vsub.s32 0, %v1565
      %v1617 = vsel %vm1615, %v1616, %v1565
      %v1618 = vshrl.u32 %v1617, 4
      %v1619 = vand.u32 %v1617, 15
      %v1620 = vsub.s32 0, %v1619
      %v1621 = vsel %vm1615, %v1620, %v1619
      %vm1622 = vcmp.ne.s32.totalorder %v1572, 0
      %vm1623 = vcmp.ne.s32.totalorder %v1579, 0
      %vm1624 = vcmp.ne.s32.totalorder %v1586, 0
      %vm1625 = vcmp.ne.s32.totalorder %v1593, 0
      %vm1626 = vcmp.ne.s32.totalorder %v1600, 0
      %vm1627 = vcmp.ne.s32.totalorder %v1607, 0
      %vm1628 = vcmp.ne.s32.totalorder %v1614, 0
      %vm1629 = vcmp.ne.s32.totalorder %v1621, 0
      %v1630 = vsel %vm1622, 1, 0
      %v1631 = vsel %vm1623, 1, 0
      %v1632 = vsel %vm1624, 1, 0
      %v1633 = vsel %vm1625, 1, 0
      %v1634 = vsel %vm1626, 1, 0
      %v1635 = vsel %vm1627, 1, 0
      %v1636 = vsel %vm1628, 1, 0
      %v1637 = vsel %vm1629, 1, 0
      %v1638 = vcvt.s32.f32 %v1630
      %v1639 = vcvt.s32.f32 %v1631
      %v1640 = vcvt.s32.f32 %v1632
      %v1641 = vcvt.s32.f32 %v1633
      %v1642 = vcvt.s32.f32 %v1634
      %v1643 = vcvt.s32.f32 %v1635
      %v1644 = vcvt.s32.f32 %v1636
      %v1645 = vcvt.s32.f32 %v1637
      %vm1646 = vcmp.ne.s32.totalorder %v1572, 15
      %vm1647 = vcmp.ne.s32.totalorder %v1579, 15
      %vm1648 = vcmp.ne.s32.totalorder %v1586, 15
      %vm1649 = vcmp.ne.s32.totalorder %v1593, 15
      %vm1650 = vcmp.ne.s32.totalorder %v1600, 15
      %vm1651 = vcmp.ne.s32.totalorder %v1607, 15
      %vm1652 = vcmp.ne.s32.totalorder %v1614, 15
      %vm1653 = vcmp.ne.s32.totalorder %v1621, 15
      %v1654 = vsel %vm1646, 1, 0
      %v1655 = vsel %vm1647, 1, 0
      %v1656 = vsel %vm1648, 1, 0
      %v1657 = vsel %vm1649, 1, 0
      %v1658 = vsel %vm1650, 1, 0
      %v1659 = vsel %vm1651, 1, 0
      %v1660 = vsel %vm1652, 1, 0
      %v1661 = vsel %vm1653, 1, 0
      %v1662 = vcvt.s32.f32 %v1654
      %v1663 = vcvt.s32.f32 %v1655
      %v1664 = vcvt.s32.f32 %v1656
      %v1665 = vcvt.s32.f32 %v1657
      %v1666 = vcvt.s32.f32 %v1658
      %v1667 = vcvt.s32.f32 %v1659
      %v1668 = vcvt.s32.f32 %v1660
      %v1669 = vcvt.s32.f32 %v1661
      loop: start=0, step=1, limit=4
      $region41: #{tpu_custom_call.1} parent=39 // loop_pre_header
        _
      $region42: #{tpu_custom_call.1} parent=39 // loop_header
        %s1671 = sphi 0, %s1675
        %p1672 = scmp.ge.s32.totalorder %s1671, 4
      $region43: #{tpu_custom_call.1} parent=39 // loop_header_branch
        %1674 = sbr.rel (%p1672) target = $region47
      $region44: #{tpu_custom_call.1} parent=39 // loop_body
        %s1676 = smul.u32 %s1671, 64
        %v1678 = vperm.slane %v1556, 0
        %s1680 = sadd.s32 %s1676, 8
        %s1681 = scalar_lea.vmem [#allocation2], %s1680
        %v1682 = vld [vmem:[%s1681] sm:$0xff]
        %v1683 = vld [vmem:[%s1681 + $0x8] sm:$0xff]
        %v1684 = vld [vmem:[%s1681 + $0x10] sm:$0xff]
        %v1685 = vld [vmem:[%s1681 + $0x18] sm:$0xff]
        %v1686 = vld [vmem:[%s1681 + $0x20] sm:$0xff]
        %v1687 = vld [vmem:[%s1681 + $0x28] sm:$0xff]
        %v1688 = vld [vmem:[%s1681 + $0x30] sm:$0xff]
        %v1689 = vld [vmem:[%s1681 + $0x38] sm:$0xff]
        %v1690 = vperm.slane %v1548, 0
        %v1691 = vmul.f32 %v1682, %v1690
        %v1692 = vmul.f32 %v1683, %v1690
        %v1693 = vmul.f32 %v1684, %v1690
        %v1694 = vmul.f32 %v1685, %v1690
        %v1695 = vmul.f32 %v1686, %v1690
        %v1696 = vmul.f32 %v1687, %v1690
        %v1697 = vmul.f32 %v1688, %v1690
        %v1698 = vmul.f32 %v1689, %v1690
        %s1699 = sadd.s32 %s1676, 24
        %s1700 = scalar_lea.vmem [#allocation2], %s1699
        %v1701 = vld [vmem:[%s1700] sm:$0xff]
        %v1702 = vld [vmem:[%s1700 + $0x8] sm:$0xff]
        %v1703 = vld [vmem:[%s1700 + $0x10] sm:$0xff]
        %v1704 = vld [vmem:[%s1700 + $0x18] sm:$0xff]
        %v1705 = vld [vmem:[%s1700 + $0x20] sm:$0xff]
        %v1706 = vld [vmem:[%s1700 + $0x28] sm:$0xff]
        %v1707 = vld [vmem:[%s1700 + $0x30] sm:$0xff]
        %v1708 = vld [vmem:[%s1700 + $0x38] sm:$0xff]
        %v1709 = vperm.slane %v1551, 0
        %v1710 = vmul.f32 %v1701, %v1709
        %v1711 = vmul.f32 %v1702, %v1709
        %v1712 = vmul.f32 %v1703, %v1709
        %v1713 = vmul.f32 %v1704, %v1709
        %v1714 = vmul.f32 %v1705, %v1709
        %v1715 = vmul.f32 %v1706, %v1709
        %v1716 = vmul.f32 %v1707, %v1709
        %v1717 = vmul.f32 %v1708, %v1709
        %v1718 = vadd.f32 %v1691, %v1710
        %v1719 = vadd.f32 %v1692, %v1711
        %v1720 = vadd.f32 %v1693, %v1712
        %v1721 = vadd.f32 %v1694, %v1713
        %v1722 = vadd.f32 %v1695, %v1714
        %v1723 = vadd.f32 %v1696, %v1715
        %v1724 = vadd.f32 %v1697, %v1716
        %v1725 = vadd.f32 %v1698, %v1717
        %s1726 = sadd.s32 %s1676, 40
        %s1727 = scalar_lea.vmem [#allocation2], %s1726
        %v1728 = vld [vmem:[%s1727] sm:$0xff]
        %v1729 = vld [vmem:[%s1727 + $0x8] sm:$0xff]
        %v1730 = vld [vmem:[%s1727 + $0x10] sm:$0xff]
        %v1731 = vld [vmem:[%s1727 + $0x18] sm:$0xff]
        %v1732 = vld [vmem:[%s1727 + $0x20] sm:$0xff]
        %v1733 = vld [vmem:[%s1727 + $0x28] sm:$0xff]
        %v1734 = vld [vmem:[%s1727 + $0x30] sm:$0xff]
        %v1735 = vld [vmem:[%s1727 + $0x38] sm:$0xff]
        %v1736 = vperm.slane %v1554, 0
        %v1737 = vmul.f32 %v1728, %v1736
        %v1738 = vmul.f32 %v1729, %v1736
        %v1739 = vmul.f32 %v1730, %v1736
        %v1740 = vmul.f32 %v1731, %v1736
        %v1741 = vmul.f32 %v1732, %v1736
        %v1742 = vmul.f32 %v1733, %v1736
        %v1743 = vmul.f32 %v1734, %v1736
        %v1744 = vmul.f32 %v1735, %v1736
        %v1745 = vadd.f32 %v1718, %v1737
        %v1746 = vadd.f32 %v1719, %v1738
        %v1747 = vadd.f32 %v1720, %v1739
        %v1748 = vadd.f32 %v1721, %v1740
        %v1749 = vadd.f32 %v1722, %v1741
        %v1750 = vadd.f32 %v1723, %v1742
        %v1751 = vadd.f32 %v1724, %v1743
        %v1752 = vadd.f32 %v1725, %v1744
        %v1753 = vadd.f32 %v1678, %v1745
        %v1754 = vadd.f32 %v1678, %v1746
        %v1755 = vadd.f32 %v1678, %v1747
        %v1756 = vadd.f32 %v1678, %v1748
        %v1757 = vadd.f32 %v1678, %v1749
        %v1758 = vadd.f32 %v1678, %v1750
        %v1759 = vadd.f32 %v1678, %v1751
        %v1760 = vadd.f32 %v1678, %v1752
        %s1761 = sadd.s32 %s1676, 7
        %s1762 = scalar_lea.vmem [#allocation2], %s1761
        %v1763 = vld [vmem:[%s1762] sm:$0xff]
        %v1764 = vld [vmem:[%s1762 + $0x8] sm:$0xff]
        %v1765 = vld [vmem:[%s1762 + $0x10] sm:$0xff]
        %v1766 = vld [vmem:[%s1762 + $0x18] sm:$0xff]
        %v1767 = vld [vmem:[%s1762 + $0x20] sm:$0xff]
        %v1768 = vld [vmem:[%s1762 + $0x28] sm:$0xff]
        %v1769 = vld [vmem:[%s1762 + $0x30] sm:$0xff]
        %v1770 = vld [vmem:[%s1762 + $0x38] sm:$0xff]
        %v1771 = vperm.slane %v1547, 0
        %v1772 = vmul.f32 %v1763, %v1771
        %v1773 = vmul.f32 %v1764, %v1771
        %v1774 = vmul.f32 %v1765, %v1771
        %v1775 = vmul.f32 %v1766, %v1771
        %v1776 = vmul.f32 %v1767, %v1771
        %v1777 = vmul.f32 %v1768, %v1771
        %v1778 = vmul.f32 %v1769, %v1771
        %v1779 = vmul.f32 %v1770, %v1771
        %s1780 = sadd.s32 %s1676, 23
        %s1781 = scalar_lea.vmem [#allocation2], %s1780
        %v1782 = vld [vmem:[%s1781] sm:$0xff]
        %v1783 = vld [vmem:[%s1781 + $0x8] sm:$0xff]
        %v1784 = vld [vmem:[%s1781 + $0x10] sm:$0xff]
        %v1785 = vld [vmem:[%s1781 + $0x18] sm:$0xff]
        %v1786 = vld [vmem:[%s1781 + $0x20] sm:$0xff]
        %v1787 = vld [vmem:[%s1781 + $0x28] sm:$0xff]
        %v1788 = vld [vmem:[%s1781 + $0x30] sm:$0xff]
        %v1789 = vld [vmem:[%s1781 + $0x38] sm:$0xff]
        %v1790 = vperm.slane %v1550, 0
        %v1791 = vmul.f32 %v1782, %v1790
        %v1792 = vmul.f32 %v1783, %v1790
        %v1793 = vmul.f32 %v1784, %v1790
        %v1794 = vmul.f32 %v1785, %v1790
        %v1795 = vmul.f32 %v1786, %v1790
        %v1796 = vmul.f32 %v1787, %v1790
        %v1797 = vmul.f32 %v1788, %v1790
        %v1798 = vmul.f32 %v1789, %v1790
        %v1799 = vadd.f32 %v1772, %v1791
        %v1800 = vadd.f32 %v1773, %v1792
        %v1801 = vadd.f32 %v1774, %v1793
        %v1802 = vadd.f32 %v1775, %v1794
        %v1803 = vadd.f32 %v1776, %v1795
        %v1804 = vadd.f32 %v1777, %v1796
        %v1805 = vadd.f32 %v1778, %v1797
        %v1806 = vadd.f32 %v1779, %v1798
        %s1807 = sadd.s32 %s1676, 39
        %s1808 = scalar_lea.vmem [#allocation2], %s1807
        %v1809 = vld [vmem:[%s1808] sm:$0xff]
        %v1810 = vld [vmem:[%s1808 + $0x8] sm:$0xff]
        %v1811 = vld [vmem:[%s1808 + $0x10] sm:$0xff]
        %v1812 = vld [vmem:[%s1808 + $0x18] sm:$0xff]
        %v1813 = vld [vmem:[%s1808 + $0x20] sm:$0xff]
        %v1814 = vld [vmem:[%s1808 + $0x28] sm:$0xff]
        %v1815 = vld [vmem:[%s1808 + $0x30] sm:$0xff]
        %v1816 = vld [vmem:[%s1808 + $0x38] sm:$0xff]
        %v1817 = vperm.slane %v1553, 0
        %v1818 = vmul.f32 %v1809, %v1817
        %v1819 = vmul.f32 %v1810, %v1817
        %v1820 = vmul.f32 %v1811, %v1817
        %v1821 = vmul.f32 %v1812, %v1817
        %v1822 = vmul.f32 %v1813, %v1817
        %v1823 = vmul.f32 %v1814, %v1817
        %v1824 = vmul.f32 %v1815, %v1817
        %v1825 = vmul.f32 %v1816, %v1817
        %v1826 = vadd.f32 %v1799, %v1818
        %v1827 = vadd.f32 %v1800, %v1819
        %v1828 = vadd.f32 %v1801, %v1820
        %v1829 = vadd.f32 %v1802, %v1821
        %v1830 = vadd.f32 %v1803, %v1822
        %v1831 = vadd.f32 %v1804, %v1823
        %v1832 = vadd.f32 %v1805, %v1824
        %v1833 = vadd.f32 %v1806, %v1825
        %v1834 = vmul.f32 %v1826, %v1638
        %v1835 = vmul.f32 %v1827, %v1639
        %v1836 = vmul.f32 %v1828, %v1640
        %v1837 = vmul.f32 %v1829, %v1641
        %v1838 = vmul.f32 %v1830, %v1642
        %v1839 = vmul.f32 %v1831, %v1643
        %v1840 = vmul.f32 %v1832, %v1644
        %v1841 = vmul.f32 %v1833, %v1645
        %v1842 = vadd.f32 %v1753, %v1834
        %v1843 = vadd.f32 %v1754, %v1835
        %v1844 = vadd.f32 %v1755, %v1836
        %v1845 = vadd.f32 %v1756, %v1837
        %v1846 = vadd.f32 %v1757, %v1838
        %v1847 = vadd.f32 %v1758, %v1839
        %v1848 = vadd.f32 %v1759, %v1840
        %v1849 = vadd.f32 %v1760, %v1841
        %s1850 = sadd.s32 %s1676, 9
        %s1851 = scalar_lea.vmem [#allocation2], %s1850
        %v1852 = vld [vmem:[%s1851] sm:$0xff]
        %v1853 = vld [vmem:[%s1851 + $0x8] sm:$0xff]
        %v1854 = vld [vmem:[%s1851 + $0x10] sm:$0xff]
        %v1855 = vld [vmem:[%s1851 + $0x18] sm:$0xff]
        %v1856 = vld [vmem:[%s1851 + $0x20] sm:$0xff]
        %v1857 = vld [vmem:[%s1851 + $0x28] sm:$0xff]
        %v1858 = vld [vmem:[%s1851 + $0x30] sm:$0xff]
        %v1859 = vld [vmem:[%s1851 + $0x38] sm:$0xff]
        %v1860 = vperm.slane %v1549, 0
        %v1861 = vmul.f32 %v1852, %v1860
        %v1862 = vmul.f32 %v1853, %v1860
        %v1863 = vmul.f32 %v1854, %v1860
        %v1864 = vmul.f32 %v1855, %v1860
        %v1865 = vmul.f32 %v1856, %v1860
        %v1866 = vmul.f32 %v1857, %v1860
        %v1867 = vmul.f32 %v1858, %v1860
        %v1868 = vmul.f32 %v1859, %v1860
        %s1869 = sadd.s32 %s1676, 25
        %s1870 = scalar_lea.vmem [#allocation2], %s1869
        %v1871 = vld [vmem:[%s1870] sm:$0xff]
        %v1872 = vld [vmem:[%s1870 + $0x8] sm:$0xff]
        %v1873 = vld [vmem:[%s1870 + $0x10] sm:$0xff]
        %v1874 = vld [vmem:[%s1870 + $0x18] sm:$0xff]
        %v1875 = vld [vmem:[%s1870 + $0x20] sm:$0xff]
        %v1876 = vld [vmem:[%s1870 + $0x28] sm:$0xff]
        %v1877 = vld [vmem:[%s1870 + $0x30] sm:$0xff]
        %v1878 = vld [vmem:[%s1870 + $0x38] sm:$0xff]
        %v1879 = vperm.slane %v1552, 0
        %v1880 = vmul.f32 %v1871, %v1879
        %v1881 = vmul.f32 %v1872, %v1879
        %v1882 = vmul.f32 %v1873, %v1879
        %v1883 = vmul.f32 %v1874, %v1879
        %v1884 = vmul.f32 %v1875, %v1879
        %v1885 = vmul.f32 %v1876, %v1879
        %v1886 = vmul.f32 %v1877, %v1879
        %v1887 = vmul.f32 %v1878, %v1879
        %v1888 = vadd.f32 %v1861, %v1880
        %v1889 = vadd.f32 %v1862, %v1881
        %v1890 = vadd.f32 %v1863, %v1882
        %v1891 = vadd.f32 %v1864, %v1883
        %v1892 = vadd.f32 %v1865, %v1884
        %v1893 = vadd.f32 %v1866, %v1885
        %v1894 = vadd.f32 %v1867, %v1886
        %v1895 = vadd.f32 %v1868, %v1887
        %s1896 = sadd.s32 %s1676, 41
        %s1897 = scalar_lea.vmem [#allocation2], %s1896
        %v1898 = vld [vmem:[%s1897] sm:$0xff]
        %v1899 = vld [vmem:[%s1897 + $0x8] sm:$0xff]
        %v1900 = vld [vmem:[%s1897 + $0x10] sm:$0xff]
        %v1901 = vld [vmem:[%s1897 + $0x18] sm:$0xff]
        %v1902 = vld [vmem:[%s1897 + $0x20] sm:$0xff]
        %v1903 = vld [vmem:[%s1897 + $0x28] sm:$0xff]
        %v1904 = vld [vmem:[%s1897 + $0x30] sm:$0xff]
        %v1905 = vld [vmem:[%s1897 + $0x38] sm:$0xff]
        %v1906 = vperm.slane %v1555, 0
        %v1907 = vmul.f32 %v1898, %v1906
        %v1908 = vmul.f32 %v1899, %v1906
        %v1909 = vmul.f32 %v1900, %v1906
        %v1910 = vmul.f32 %v1901, %v1906
        %v1911 = vmul.f32 %v1902, %v1906
        %v1912 = vmul.f32 %v1903, %v1906
        %v1913 = vmul.f32 %v1904, %v1906
        %v1914 = vmul.f32 %v1905, %v1906
        %v1915 = vadd.f32 %v1888, %v1907
        %v1916 = vadd.f32 %v1889, %v1908
        %v1917 = vadd.f32 %v1890, %v1909
        %v1918 = vadd.f32 %v1891, %v1910
        %v1919 = vadd.f32 %v1892, %v1911
        %v1920 = vadd.f32 %v1893, %v1912
        %v1921 = vadd.f32 %v1894, %v1913
        %v1922 = vadd.f32 %v1895, %v1914
        %v1923 = vmul.f32 %v1915, %v1662
        %v1924 = vmul.f32 %v1916, %v1663
        %v1925 = vmul.f32 %v1917, %v1664
        %v1926 = vmul.f32 %v1918, %v1665
        %v1927 = vmul.f32 %v1919, %v1666
        %v1928 = vmul.f32 %v1920, %v1667
        %v1929 = vmul.f32 %v1921, %v1668
        %v1930 = vmul.f32 %v1922, %v1669
        %v1931 = vadd.f32 %v1842, %v1923
        %v1932 = vadd.f32 %v1843, %v1924
        %v1933 = vadd.f32 %v1844, %v1925
        %v1934 = vadd.f32 %v1845, %v1926
        %v1935 = vadd.f32 %v1846, %v1927
        %v1936 = vadd.f32 %v1847, %v1928
        %v1937 = vadd.f32 %v1848, %v1929
        %v1938 = vadd.f32 %v1849, %v1930
        %s1939 = scalar_lea.vmem %s224, %s1676
        %1940 = vst.msk [vmem:[%s1939] sm:$0xff] %vm225, %v1931
        %1941 = vst.msk [vmem:[%s1939 + $0x8] sm:$0xff] %vm225, %v1932
        %1942 = vst.msk [vmem:[%s1939 + $0x10] sm:$0xff] %vm225, %v1933
        %1943 = vst.msk [vmem:[%s1939 + $0x18] sm:$0xff] %vm225, %v1934
        %1944 = vst.msk [vmem:[%s1939 + $0x20] sm:$0xff] %vm225, %v1935
        %1945 = vst.msk [vmem:[%s1939 + $0x28] sm:$0xff] %vm225, %v1936
        %1946 = vst.msk [vmem:[%s1939 + $0x30] sm:$0xff] %vm225, %v1937
        %1947 = vst.msk [vmem:[%s1939 + $0x38] sm:$0xff] %vm225, %v1938
      $region45: #{tpu_custom_call.1} parent=39 // loop_footer
        %s1675 = sadd.s32 1, %s1671
      $region46: #{tpu_custom_call.1} parent=39 // loop_footer_branch
        %1670 = sbr.rel target = $region42
      $region47: #{tpu_custom_call.1} parent=39 // loop_exit
        _
      %p1948 = scmp.lt.s32.totalorder %s16, 1
      %s1949 = scalar_select %p1948, %s16, 1
      %s1950 = smul.addr %s1949, 32
      %s1951 = smul.addr %s1950, 8
      %s1952 = scalar_lea.vmem %s5, %s1951
      // Predicated region
      $region48: #{tpu_custom_call.1} parent=39 // pred_check
        %p1953 = pneg %p144
      $region49: #{tpu_custom_call.1} parent=39 // pred_check_branch
        %1955 = sbr.rel (%p1953) target = $region51
      $region50: #{tpu_custom_call.1} parent=39 // pred_region
        _
      $region51: #{tpu_custom_call.1} parent=39 // pred_fallthru
        _
    $region40: #{tpu_custom_call.1} parent=5 // pred_fallthru
      _
    %p1956 = scmp.le.s32.totalorder 2, %s11
    // Predicated region
    $region52: #{tpu_custom_call.1} parent=5 // pred_check
      %p1957 = pneg %p1956
    $region53: #{tpu_custom_call.1} parent=5 // pred_check_branch
      %1959 = sbr.rel (%p1957) target = $region55
    $region54: #{tpu_custom_call.1} parent=5 // pred_region
      %s1960 = ssub.s32 %s11, 2
      // Predicated region
      $region56: #{tpu_custom_call.1} parent=54 // pred_check
        %p1961 = pneg %p150
      $region57: #{tpu_custom_call.1} parent=54 // pred_check_branch
        %1963 = sbr.rel (%p1961) target = $region59
      $region58: #{tpu_custom_call.1} parent=54 // pred_region
        %p1964 = scmp.lt.s32.totalorder %s17, 1
        %s1965 = scalar_select %p1964, %s17, 1
        %s1966 = smul.addr %s1965, 32
        %s1967 = smul.addr %s1966, 8
        %s1968 = scalar_lea.vmem %s5, %s1967
      $region59: #{tpu_custom_call.1} parent=54 // pred_fallthru
        _
    $region55: #{tpu_custom_call.1} parent=5 // pred_fallthru
      _
  $region6: #{tpu_custom_call.1} parent=0 // loop_footer
    %s15 = sadd.s32 1, %s11
  $region7: #{tpu_custom_call.1} parent=0 // loop_footer_branch
    %10 = sbr.rel target = $region3
  $region8: #{tpu_custom_call.1} parent=0 // loop_exit
    _

</llo_original>
